<compile_context>
chip_gen: v7x
topology: tpu7x:2x2x1
jax: 0.10.0
libtpu: 0.0.40
codegen_flags: <defaults>
</compile_context>

<pallas_src>
import jax
import jax.numpy as jnp
from jax.experimental import pallas as pl
from jax.experimental.pallas import tpu as pltpu


# ---------------------------------------------------------------------------
# small helpers
# ---------------------------------------------------------------------------
def _round_up(v, m):
    return (v + m - 1) // m * m


def _full_spec(arr):
    nd = arr.ndim
    return pl.BlockSpec(arr.shape, lambda i, _nd=nd: (0,) * _nd)


# ---------------------------------------------------------------------------
# Kernel variant 1: dense / lane-dense banded matmuls (small H*C).
#   x:(TM, H*Cin) -> out:(TM, H*Cout);  3 wide MXU matmuls + GLU gate.
# ---------------------------------------------------------------------------
def _make_dense_kernel(project):
    def kernel(*refs):
        if project:
            x_ref, wa, ba, wb, bb, wr, br, o_ref = refs
        else:
            x_ref, wa, ba, wb, bb, o_ref = refs
        x = x_ref[...]                                   # (TM, H*Cin)
        xb = x.astype(jnp.bfloat16)
        a = jnp.dot(xb, wa[...], preferred_element_type=jnp.float32) + ba[...]
        g = jnp.dot(xb, wb[...], preferred_element_type=jnp.float32) + bb[...]
        if project:
            res = jnp.dot(xb, wr[...], preferred_element_type=jnp.float32) + br[...]
        else:
            res = x.astype(jnp.float32)                  # identity residual (exact f32)
        o_ref[...] = a * jax.nn.sigmoid(g) + res
    return kernel


# ---------------------------------------------------------------------------
# Kernel variant 2: general per-tap accumulation (any H*C).
#   x:(TM, H, Cin) -> out:(TM, H, Cout);  k accumulated matmuls per path against
#   folded per-tap (Cin, Cout) weights; no lane-axis concat of shifted views.
# ---------------------------------------------------------------------------
def _make_taps_kernel(project, k, tm, h):
    def kernel(*refs):
        if project:
            x_ref, wa_ref, ba_ref, wb_ref, bb_ref, wr_ref, br_ref, o_ref = refs
        else:
            x_ref, wa_ref, ba_ref, wb_ref, bb_ref, o_ref = refs
        x = x_ref[...]                                   # (TM, H, Cin)
        cin = x.shape[-1]
        rows = tm * h
        x2 = x.reshape(rows, cin)                        # minor-dim preserving reshape
        if project:
            res = jnp.dot(x2.astype(jnp.bfloat16), wr_ref[...],
                          preferred_element_type=jnp.float32) + br_ref[...]
        else:
            res = x2.astype(jnp.float32)
        # causal taps: out[t] = bias + sum_j x[t - (k-1-j)] @ taps[j],  x[<0] = 0
        if k > 1:
            xpad = jnp.concatenate(
                [jnp.zeros((tm, k - 1, cin), x.dtype), x], axis=1)   # (TM, H+k-1, Cin)
        else:
            xpad = x
        wa = wa_ref[...]                                 # (k*Cin, Cout) bf16
        wb = wb_ref[...]
        cout = wa.shape[-1]
        acc_a = jnp.zeros((rows, cout), jnp.float32)
        acc_b = jnp.zeros((rows, cout), jnp.float32)
        for j in range(k):                               # k is small and static
            v = xpad[:, j:j + h, :].reshape(rows, cin).astype(jnp.bfloat16)
            acc_a += jnp.dot(v, wa[j * cin:(j + 1) * cin, :],
                             preferred_element_type=jnp.float32)
            acc_b += jnp.dot(v, wb[j * cin:(j + 1) * cin, :],
                             preferred_element_type=jnp.float32)
        out = (acc_a + ba_ref[...]) * jax.nn.sigmoid(acc_b + bb_ref[...]) + res
        o_ref[...] = out.reshape(tm, h, cout)
    return kernel


# ---------------------------------------------------------------------------
# Wrapper: host-side weight folding, tiling, pallas_call.
# ---------------------------------------------------------------------------
def glu_block(x, p, kernel_size, *, force_general=False):
    """GLUblock forward. x: (N, Cin, H, W) f32 -> (N, Cout, H, W) f32."""
    N, Cin, H, W = x.shape
    k = kernel_size
    Cout = p["wa3"].shape[1]
    project = Cin != Cout
    M = N * W
    f32, bf16 = jnp.float32, jnp.bfloat16

    # ---- host-side folding of the three linear conv stages (tiny math) -------
    def fold(w1, b1, w2, b2, w3, b3):
        taps = jnp.einsum("ic,kcd,de->kie", w1, w2, w3)          # (k, Cin, Cout)
        bias = b3 + (b2 + b1 @ jnp.sum(w2, axis=0)) @ w3          # (1, Cout)
        return taps, bias

    taps_a, bias_a = fold(p["wa1"], p["ba1"], p["wa2"], p["ba2"], p["wa3"], p["ba3"])
    taps_b, bias_b = fold(p["wb1"], p["bb1"], p["wb2"], p["bb2"], p["wb3"], p["bb3"])

    dense_w_bytes = (3 if project else 2) * (H * Cin) * (H * Cout) * 2
    use_dense = (not force_general and H * Cin <= 2048 and H * Cout <= 2048
                 and dense_w_bytes <= (8 << 20))

    in_dtype = bf16 if project else f32      # identity residual keeps exact f32 x
    in_bytes = 2 if project else 4
    r8 = lambda v: _round_up(v, 8)
    r128 = lambda v: _round_up(v, 128)

    # channels-last; fold (N, W) into M independent columns (the causal conv only
    # runs over H, so every (n, w) column is independent work).
    x_nwhc = jnp.transpose(x, (0, 3, 2, 1))                      # (N, W, H, Cin)

    if use_dense:
        # fold the k taps into one banded (H*Cin, H*Cout) matrix per path.
        def banded(taps):
            w = jnp.zeros((H, Cin, H, Cout), f32)
            for j in range(k):
                s = k - 1 - j                      # output row t = input row u + s
                u = jnp.arange(0, max(H - s, 0))
                w = w.at[u, :, u + s, :].set(taps[j])
            return w.reshape(H * Cin, H * Cout)

        weights = [banded(taps_a).astype(bf16), jnp.tile(bias_a, (1, H)),
                   banded(taps_b).astype(bf16), jnp.tile(bias_b, (1, H))]
        if project:
            u = jnp.arange(H)
            wr_d = (jnp.zeros((H, Cin, H, Cout), f32).at[u, :, u, :].set(p["wres"])
                    .reshape(H * Cin, H * Cout).astype(bf16))
            weights += [wr_d, jnp.tile(p["bres"], (1, H))]

        xin = x_nwhc.reshape(M, H * Cin).astype(in_dtype)

        # VMEM bytes per M-row: double-buffered lane-dense x/out blocks plus the
        # f32 temporaries (A, gate, residual, gated out) and the bf16 x cast.
        per_row = (2 * r128(H * Cin) * in_bytes + 2 * r128(H * Cout) * 4
                   + 4 * r128(H * Cout) * 4 + r128(H * Cin) * 2)
    else:
        weights = [taps_a.reshape(k * Cin, Cout).astype(bf16), bias_a,
                   taps_b.reshape(k * Cin, Cout).astype(bf16), bias_b]
        if project:
            weights += [p["wres"].astype(bf16), p["bres"]]

        xin = x_nwhc.reshape(M, H, Cin).astype(in_dtype)

        # 3-D blocks pad Cin/Cout up to 128 lanes in VMEM; account for that.
        per_row = (2 * r8(H) * r128(Cin) * in_bytes            # x block (x2 buffers)
                   + 2 * r8(H) * r128(Cout) * 4                # out block (x2 buffers)
                   + 2 * r8(H + k - 1) * r128(Cin) * in_bytes  # zero-padded x + slice copy
                   + 6 * H * r128(Cout) * 4)                   # res/acc_a/acc_b/gate temps

    weight_vmem = sum(r8(w.shape[-2]) * r128(w.shape[-1]) * w.dtype.itemsize
                      for w in weights)

    # ---- M tile: as big as the VMEM budget allows (amortises the ~0.35 us
    # per-grid-step overhead); budget is conservative even for v7x (64 MiB VMEM).
    budget = (24 << 20) - weight_vmem
    tm = min(M,
             max(8, budget // max(per_row, 1)),
             max(8, 16384 // max(H, 1)))           # keep the per-step matmul M dim sane
    # v7x has 2 TensorCores: keep >=2 grid steps when there is enough work so the
    # "parallel" grid axis can actually feed both.
    if tm >= M and M >= 2 * max(8, 512 // max(H, 1)):
        tm = pl.cdiv(M, 2)
    if tm < M:
        tm = _round_up(tm, 8)                      # sublane-aligned blocks
    grid_m = pl.cdiv(M, tm)
    Mp = grid_m * tm
    if Mp != M:
        # Padded rows produce bias-driven garbage that is sliced off below — do not
        # ever reduce over the padded rows.
        xin = jnp.pad(xin, [(0, Mp - M)] + [(0, 0)] * (xin.ndim - 1))
    ins = [xin] + weights

    rows = M * H
    n_mm = 2 * k + (1 if project else 0)
    cost = pl.CostEstimate(
        flops=int(2 * rows * Cin * Cout * n_mm),
        transcendentals=int(rows * Cout),
        bytes_accessed=int(rows * Cin * in_bytes + rows * Cout * 4
                           + sum(int(w.size) * w.dtype.itemsize for w in weights)),
    )
    cparams = pltpu.CompilerParams(
        dimension_semantics=("parallel",),         # independent (n, w) columns
        vmem_limit_bytes=48 * 1024 * 1024,         # > v5e's 16 MiB default, < v7x physical
    )

    if use_dense:
        out = pl.pallas_call(
            _make_dense_kernel(project),
            out_shape=jax.ShapeDtypeStruct((Mp, H * Cout), f32),
            grid=(grid_m,),
            in_specs=[pl.BlockSpec((tm, H * Cin), lambda i: (i, 0))]
                     + [_full_spec(a) for a in ins[1:]],
            out_specs=pl.BlockSpec((tm, H * Cout), lambda i: (i, 0)),
            compiler_params=cparams,
            cost_estimate=cost,
        )(*ins)
    else:
        out = pl.pallas_call(
            _make_taps_kernel(project, k, tm, H),
            out_shape=jax.ShapeDtypeStruct((Mp, H, Cout), f32),
            grid=(grid_m,),
            in_specs=[pl.BlockSpec((tm, H, Cin), lambda i: (i, 0, 0))]
                     + [_full_spec(a) for a in ins[1:]],
            out_specs=pl.BlockSpec((tm, H, Cout), lambda i: (i, 0, 0)),
            compiler_params=cparams,
            cost_estimate=cost,
        )(*ins)

    out = out[:M].reshape(N, W, H, Cout)
    return jnp.transpose(out, (0, 3, 2, 1))                      # back to NCHW


# ---------------------------------------------------------------------------
# Parameters (weight_norm applied as a host-side parameter transform).
# ---------------------------------------------------------------------------
def _weight_norm(v, g, axes):
    # nn.utils.weight_norm with dim=0 (output-channel dim):  w = g * v / ||v||
    return v * (g / jnp.sqrt(jnp.sum(v * v, axis=axes, keepdims=True)))


def init_glu_params(key, in_c, out_c, bneck, k):
    cb = in_c // bneck
    ks = iter(jax.random.split(key, 24))

    def conv1x1(ci, co):
        v = 0.1 * jax.random.normal(next(ks), (ci, co), jnp.float32)
        g = jax.random.uniform(next(ks), (1, co), jnp.float32, 0.5, 1.5)
        return _weight_norm(v, g, axes=(0,))

    def convk1(ci, co):
        v = 0.1 * jax.random.normal(next(ks), (k, ci, co), jnp.float32)
        g = jax.random.uniform(next(ks), (1, 1, co), jnp.float32, 0.5, 1.5)
        return _weight_norm(v, g, axes=(0, 1))

    def bias(co):
        return 0.1 * jax.random.normal(next(ks), (1, co), jnp.float32)

    p = {
        "wa1": conv1x1(in_c, cb),  "ba1": bias(cb),
        "wa2": convk1(cb, cb),     "ba2": bias(cb),
        "wa3": conv1x1(cb, out_c), "ba3": bias(out_c),
        "wb1": conv1x1(in_c, cb),  "bb1": bias(cb),
        "wb2": convk1(cb, cb),     "bb2": bias(cb),
        "wb3": conv1x1(cb, out_c), "bb3": bias(out_c),
    }
    if in_c != out_c:
        p["wres"] = conv1x1(in_c, out_c)
        p["bres"] = bias(out_c)
    return p


# ---------------------------------------------------------------------------
# Pure-JAX reference (mirrors the PyTorch GLUblock forward, all f32).
# ---------------------------------------------------------------------------
def glu_block_ref(x, p, k):
    N, Cin, H, W = x.shape
    Cout = p["wa3"].shape[1]
    xm = jnp.transpose(x, (0, 3, 2, 1)).reshape(N * W, H, Cin)

    if Cin == Cout:
        res = xm
    else:
        res = jnp.einsum("mhc,cd->mhd", xm, p["wres"]) + p["bres"]

    xp = jnp.concatenate(
        [jnp.zeros((N * W, k - 1, Cin), jnp.float32), xm], axis=1)   # causal pad

    def path(w1, b1, w2, b2, w3, b3):
        h1 = jnp.einsum("mhc,cd->mhd", xp, w1) + b1
        h2 = b2 + sum(jnp.einsum("mhc,cd->mhd", h1[:, t:t + H, :], w2[t])
                      for t in range(k))
        return jnp.einsum("mhc,cd->mhd", h2, w3) + b3

    a = path(p["wa1"], p["ba1"], p["wa2"], p["ba2"], p["wa3"], p["ba3"])
    b = path(p["wb1"], p["bb1"], p["wb2"], p["bb2"], p["wb3"], p["bb3"])
    out = a * jax.nn.sigmoid(b) + res
    return jnp.transpose(out.reshape(N, W, H, Cout), (0, 3, 2, 1))


if __name__ == "__main__":
    key = jax.random.PRNGKey(0)
    k_x, k_p1, k_p2 = jax.random.split(key, 3)

    kernel_size = 3
    N, Cin, H, W = 2, 16, 16, 16
    Cout = 32
    bottleneck = 4

    x = 0.1 * jax.random.normal(k_x, (N, Cin, H, W), jnp.float32)

    p1 = init_glu_params(k_p1, Cin, Cout, bottleneck, kernel_size)    # projecting residual
    p2 = init_glu_params(k_p2, Cout, Cout, bottleneck, kernel_size)   # identity residual

    # dense (lane-dense banded-matmul) variant: two stacked GLU blocks
    h1 = glu_block(x, p1, kernel_size)
    h2 = glu_block(h1, p2, kernel_size)
    # general (per-tap accumulation) variant, forced, on the same inputs
    g1 = glu_block(x, p1, kernel_size, force_general=True)
    g2 = glu_block(h1, p2, kernel_size, force_general=True)
    jax.block_until_ready((h2, g1, g2))

    r1 = glu_block_ref(x, p1, kernel_size)
    r2 = glu_block_ref(r1, p2, kernel_size)

    assert h2.shape == (N, Cout, H, W)
    for got, want in ((h1, r1), (h2, r2), (g1, r1), (g2, r2)):
        err = float(jnp.max(jnp.abs(got - want)))
        assert err < 3e-2, f"max abs error vs reference: {err}"
    print("KERNEL_OK")
</pallas_src>

<mosaic_0001>
module attributes {stable_mosaic.version = 11 : i64} {
  func.func @kernel(%arg0: i32, %arg1: memref<32x256xbf16, #tpu.memory_space<vmem>>, %arg2: memref<256x512xbf16, #tpu.memory_space<vmem>>, %arg3: memref<1x512xf32, #tpu.memory_space<vmem>>, %arg4: memref<256x512xbf16, #tpu.memory_space<vmem>>, %arg5: memref<1x512xf32, #tpu.memory_space<vmem>>, %arg6: memref<256x512xbf16, #tpu.memory_space<vmem>>, %arg7: memref<1x512xf32, #tpu.memory_space<vmem>>, %arg8: memref<32x512xf32, #tpu.memory_space<vmem>>) attributes {dimension_semantics = [#tpu.dimension_semantics<parallel>], iteration_bounds = array<i64: 1>, scalar_prefetch = 0 : i64, scratch_operands = 0 : i64, tpu.core_type = #tpu.core_type<tc>, window_params = [{transform_indices = @transform_0, window_bounds = array<i64: 32, 256>}, {pipeline_mode = #tpu.pipeline_mode<synchronous>, transform_indices = @transform_1, window_bounds = array<i64: 256, 512>}, {pipeline_mode = #tpu.pipeline_mode<synchronous>, transform_indices = @transform_2, window_bounds = array<i64: 1, 512>}, {pipeline_mode = #tpu.pipeline_mode<synchronous>, transform_indices = @transform_3, window_bounds = array<i64: 256, 512>}, {pipeline_mode = #tpu.pipeline_mode<synchronous>, transform_indices = @transform_4, window_bounds = array<i64: 1, 512>}, {pipeline_mode = #tpu.pipeline_mode<synchronous>, transform_indices = @transform_5, window_bounds = array<i64: 256, 512>}, {pipeline_mode = #tpu.pipeline_mode<synchronous>, transform_indices = @transform_6, window_bounds = array<i64: 1, 512>}, {transform_indices = @transform_7, window_bounds = array<i64: 32, 512>}]} {
    %c0 = arith.constant 0 : index
    %c0_0 = arith.constant 0 : index
    %0 = vector.load %arg1[%c0, %c0_0] : memref<32x256xbf16, #tpu.memory_space<vmem>>, vector<32x256xbf16>
    %c0_1 = arith.constant 0 : index
    %c0_2 = arith.constant 0 : index
    %1 = vector.load %arg2[%c0_1, %c0_2] : memref<256x512xbf16, #tpu.memory_space<vmem>>, vector<256x512xbf16>
    %cst = arith.constant dense<0.000000e+00> : vector<32x512xf32>
    %2 = tpu.matmul %0, %1, %cst {dimension_numbers = #tpu.dot_dimension_numbers<[1], [0], [0], [1], [0, 0, 1, 1], [], []>} : vector<32x256xbf16>, vector<256x512xbf16>, vector<32x512xf32> -> vector<32x512xf32>
    %c0_3 = arith.constant 0 : index
    %c0_4 = arith.constant 0 : index
    %3 = vector.load %arg3[%c0_3, %c0_4] : memref<1x512xf32, #tpu.memory_space<vmem>>, vector<1x512xf32>
    %4 = vector.broadcast %3 : vector<1x512xf32> to vector<32x512xf32>
    %5 = arith.addf %2, %4 : vector<32x512xf32>
    %c0_5 = arith.constant 0 : index
    %c0_6 = arith.constant 0 : index
    %6 = vector.load %arg4[%c0_5, %c0_6] : memref<256x512xbf16, #tpu.memory_space<vmem>>, vector<256x512xbf16>
    %cst_7 = arith.constant dense<0.000000e+00> : vector<32x512xf32>
    %7 = tpu.matmul %0, %6, %cst_7 {dimension_numbers = #tpu.dot_dimension_numbers<[1], [0], [0], [1], [0, 0, 1, 1], [], []>} : vector<32x256xbf16>, vector<256x512xbf16>, vector<32x512xf32> -> vector<32x512xf32>
    %c0_8 = arith.constant 0 : index
    %c0_9 = arith.constant 0 : index
    %8 = vector.load %arg5[%c0_8, %c0_9] : memref<1x512xf32, #tpu.memory_space<vmem>>, vector<1x512xf32>
    %9 = vector.broadcast %8 : vector<1x512xf32> to vector<32x512xf32>
    %10 = arith.addf %7, %9 : vector<32x512xf32>
    %c0_10 = arith.constant 0 : index
    %c0_11 = arith.constant 0 : index
    %11 = vector.load %arg6[%c0_10, %c0_11] : memref<256x512xbf16, #tpu.memory_space<vmem>>, vector<256x512xbf16>
    %cst_12 = arith.constant dense<0.000000e+00> : vector<32x512xf32>
    %12 = tpu.matmul %0, %11, %cst_12 {dimension_numbers = #tpu.dot_dimension_numbers<[1], [0], [0], [1], [0, 0, 1, 1], [], []>} : vector<32x256xbf16>, vector<256x512xbf16>, vector<32x512xf32> -> vector<32x512xf32>
    %c0_13 = arith.constant 0 : index
    %c0_14 = arith.constant 0 : index
    %13 = vector.load %arg7[%c0_13, %c0_14] : memref<1x512xf32, #tpu.memory_space<vmem>>, vector<1x512xf32>
    %14 = vector.broadcast %13 : vector<1x512xf32> to vector<32x512xf32>
    %15 = arith.addf %12, %14 : vector<32x512xf32>
    %16 = arith.negf %10 : vector<32x512xf32>
    %17 = math.exp %16 : vector<32x512xf32>
    %cst_15 = arith.constant 1.000000e+00 : f32
    %18 = vector.broadcast %cst_15 : f32 to vector<32x512xf32>
    %19 = arith.addf %18, %17 : vector<32x512xf32>
    %20 = arith.divf %18, %19 : vector<32x512xf32>
    %21 = arith.mulf %5, %20 : vector<32x512xf32>
    %22 = arith.addf %21, %15 : vector<32x512xf32>
    %c0_16 = arith.constant 0 : index
    %c0_17 = arith.constant 0 : index
    %23 = vector.load %arg8[%c0_16, %c0_17] : memref<32x512xf32, #tpu.memory_space<vmem>>, vector<32x512xf32>
    tpu.vector_store %arg8[%c0_16, %c0_17], %22 {strides = array<i32>} : memref<32x512xf32, #tpu.memory_space<vmem>>, vector<32x512xf32>,
    return
  }
  func.func @transform_0(%arg0: i32) -> (i32, i32) {
    %c0_i32 = arith.constant 0 : i32
    %c0_i32_0 = arith.constant 0 : i32
    return %arg0, %c0_i32 : i32, i32
  }
  func.func @transform_1(%arg0: i32) -> (i32, i32) {
    %c0_i32 = arith.constant 0 : i32
    %c0_i32_0 = arith.constant 0 : i32
    %c0_i32_1 = arith.constant 0 : i32
    return %c0_i32, %c0_i32_0 : i32, i32
  }
  func.func @transform_2(%arg0: i32) -> (i32, i32) {
    %c0_i32 = arith.constant 0 : i32
    %c0_i32_0 = arith.constant 0 : i32
    %c0_i32_1 = arith.constant 0 : i32
    return %c0_i32, %c0_i32_0 : i32, i32
  }
  func.func @transform_3(%arg0: i32) -> (i32, i32) {
    %c0_i32 = arith.constant 0 : i32
    %c0_i32_0 = arith.constant 0 : i32
    %c0_i32_1 = arith.constant 0 : i32
    return %c0_i32, %c0_i32_0 : i32, i32
  }
  func.func @transform_4(%arg0: i32) -> (i32, i32) {
    %c0_i32 = arith.constant 0 : i32
    %c0_i32_0 = arith.constant 0 : i32
    %c0_i32_1 = arith.constant 0 : i32
    return %c0_i32, %c0_i32_0 : i32, i32
  }
  func.func @transform_5(%arg0: i32) -> (i32, i32) {
    %c0_i32 = arith.constant 0 : i32
    %c0_i32_0 = arith.constant 0 : i32
    %c0_i32_1 = arith.constant 0 : i32
    return %c0_i32, %c0_i32_0 : i32, i32
  }
  func.func @transform_6(%arg0: i32) -> (i32, i32) {
    %c0_i32 = arith.constant 0 : i32
    %c0_i32_0 = arith.constant 0 : i32
    %c0_i32_1 = arith.constant 0 : i32
    return %c0_i32, %c0_i32_0 : i32, i32
  }
  func.func @transform_7(%arg0: i32) -> (i32, i32) {
    %c0_i32 = arith.constant 0 : i32
    %c0_i32_0 = arith.constant 0 : i32
    return %arg0, %c0_i32 : i32, i32
  }
}

</mosaic_0001>

<llo_original>
// kernel: tpu_custom_call.1
$region0: #{tpu_custom_call.1}
  #allocation0 [shape = 'u32[]', space=smem, size = 0x4, offset = 0x4, fixed_abs, tag = 'smem constant byte address 0x4 - core index']
  #allocation1 [shape = 'u32[144,128]{1,0:T(1,128)}', space=vmem, size = 0x12000, scoped, tag = 'internal scratch']
  %s0 = inlined_call_operand.hbm [shape: bf16[32,256], index: 0, kind: input, shape index: {}]
  %s1 = inlined_call_operand.hbm [shape: bf16[256,512], index: 1, kind: input, shape index: {}]
  %s2 = inlined_call_operand.vmem [shape: f32[1,512], index: 2, kind: input, shape index: {}]
  %s3 = inlined_call_operand.hbm [shape: bf16[256,512], index: 3, kind: input, shape index: {}]
  %s4 = inlined_call_operand.vmem [shape: f32[1,512], index: 4, kind: input, shape index: {}]
  %s5 = inlined_call_operand.hbm [shape: bf16[256,512], index: 5, kind: input, shape index: {}]
  %s6 = inlined_call_operand.vmem [shape: f32[1,512], index: 6, kind: input, shape index: {}]
  %s7 = inlined_call_operand.hbm [shape: f32[32,512], index: 7, kind: output, shape index: {}]
  %s8 = sld [smem:[#allocation0]]
  $region54: #{tpu_custom_call.1} parent=0
    _
  %s10 = ssub.s32 1, %s8
  %s11 = scalar_select 0, %s10, %s8
  $region1: #{tpu_custom_call.1} parent=0
    #allocation2 [shape = 'u8[16384]{0}', space=vmem, size = 0x4000, scoped, tag = 'input window, operand 0, single buffered']
    #allocation3 [shape = 's32[1]{0}', space=sflag, size = 0x4, scoped, tag = 'scoped memory for tpu_custom_call.1']
    #allocation4 [shape = 's32[1]{0}', space=sflag, size = 0x4, scoped, tag = 'scoped memory for tpu_custom_call.1']
    #allocation5 [shape = 'u8[262144]{0}', space=vmem, size = 0x40000, scoped, tag = 'input window, operand 1, single buffered']
    #allocation6 [shape = 's32[1]{0}', space=sflag, size = 0x4, scoped, tag = 'scoped memory for tpu_custom_call.1']
    #allocation7 [shape = 'u8[262144]{0}', space=vmem, size = 0x40000, scoped, tag = 'input window, operand 3, single buffered']
    #allocation8 [shape = 'u8[262144]{0}', space=vmem, size = 0x40000, scoped, tag = 'input window, operand 5, single buffered']
    #allocation9 [shape = 's32[1]{0}', space=sflag, size = 0x4, scoped, tag = 'scoped memory for tpu_custom_call.1']
    #allocation10 [shape = 'u8[65536]{0}', space=vmem, size = 0x10000, scoped, tag = 'output window, operand 0, single buffered']
    %12 = vsyncpa [#allocation3], 0
    %13 = vsyncpa [#allocation6], 0
    %14 = vsyncpa [#allocation9], 0
    %15 = vsyncpa [#allocation4], 0
    // Predicated region
    $region2: #{tpu_custom_call.1} parent=1 // pred_check
      _
    $region3: #{tpu_custom_call.1} parent=1 // pred_check_branch
      %17 = sbr.rel (0) target = $region5
    $region4: #{tpu_custom_call.1} parent=1 // pred_region
      %s19 = ssub.s32 512, 512
      %20 = vsyncadd [#allocation3], %s19
      %s21 = sshll.u32 [#allocation2], 4
      %s22 = int_to_ptr.vmem [resolvable:$true] %s21
      %27 = dma.hbm_to_vmem [thread:$0]  %s0, 512, %s22, [#allocation3], 128, 128, 8
    $region5: #{tpu_custom_call.1} parent=1 // pred_fallthru
      _
    // Predicated region
    $region6: #{tpu_custom_call.1} parent=1 // pred_check
      _
    $region7: #{tpu_custom_call.1} parent=1 // pred_check_branch
      %29 = sbr.rel (0) target = $region9
    $region8: #{tpu_custom_call.1} parent=1 // pred_region
      %s31 = ssub.s32 8192, 8192
      %32 = vsyncadd [#allocation6], %s31
      %s33 = sshll.u32 [#allocation5], 4
      %s34 = int_to_ptr.vmem [resolvable:$true] %s33
      %39 = dma.hbm_to_vmem [thread:$0]  %s1, 8192, %s34, [#allocation6], 256, 256, 16
    $region9: #{tpu_custom_call.1} parent=1 // pred_fallthru
      _
    // Predicated region
    $region10: #{tpu_custom_call.1} parent=1 // pred_check
      _
    $region11: #{tpu_custom_call.1} parent=1 // pred_check_branch
      %41 = sbr.rel (0) target = $region13
    $region12: #{tpu_custom_call.1} parent=1 // pred_region
      _
    $region13: #{tpu_custom_call.1} parent=1 // pred_fallthru
      _
    // Predicated region
    $region14: #{tpu_custom_call.1} parent=1 // pred_check
      _
    $region15: #{tpu_custom_call.1} parent=1 // pred_check_branch
      %43 = sbr.rel (0) target = $region17
    $region16: #{tpu_custom_call.1} parent=1 // pred_region
      %s45 = ssub.s32 8192, 8192
      %46 = vsyncadd [#allocation6], %s45
      %s47 = sshll.u32 [#allocation7], 4
      %s48 = int_to_ptr.vmem [resolvable:$true] %s47
      %53 = dma.hbm_to_vmem [thread:$0]  %s3, 8192, %s48, [#allocation6], 256, 256, 16
    $region17: #{tpu_custom_call.1} parent=1 // pred_fallthru
      _
    // Predicated region
    $region18: #{tpu_custom_call.1} parent=1 // pred_check
      _
    $region19: #{tpu_custom_call.1} parent=1 // pred_check_branch
      %55 = sbr.rel (0) target = $region21
    $region20: #{tpu_custom_call.1} parent=1 // pred_region
      _
    $region21: #{tpu_custom_call.1} parent=1 // pred_fallthru
      _
    // Predicated region
    $region22: #{tpu_custom_call.1} parent=1 // pred_check
      _
    $region23: #{tpu_custom_call.1} parent=1 // pred_check_branch
      %57 = sbr.rel (0) target = $region25
    $region24: #{tpu_custom_call.1} parent=1 // pred_region
      %s59 = ssub.s32 8192, 8192
      %60 = vsyncadd [#allocation9], %s59
      %s61 = sshll.u32 [#allocation8], 4
      %s62 = int_to_ptr.vmem [resolvable:$true] %s61
      %67 = dma.hbm_to_vmem [thread:$0]  %s5, 8192, %s62, [#allocation9], 256, 256, 16
    $region25: #{tpu_custom_call.1} parent=1 // pred_fallthru
      _
    // Predicated region
    $region26: #{tpu_custom_call.1} parent=1 // pred_check
      _
    $region27: #{tpu_custom_call.1} parent=1 // pred_check_branch
      %69 = sbr.rel (0) target = $region29
    $region28: #{tpu_custom_call.1} parent=1 // pred_region
      _
    $region29: #{tpu_custom_call.1} parent=1 // pred_fallthru
      _
    // Predicated region
    $region30: #{tpu_custom_call.1} parent=1 // pred_check
      _
    $region31: #{tpu_custom_call.1} parent=1 // pred_check_branch
      %71 = sbr.rel (0) target = $region33
    $region32: #{tpu_custom_call.1} parent=1 // pred_region
      %72 = dma.done [#allocation3], 512
    $region33: #{tpu_custom_call.1} parent=1 // pred_fallthru
      _
    // Predicated region
    $region34: #{tpu_custom_call.1} parent=1 // pred_check
      _
    $region35: #{tpu_custom_call.1} parent=1 // pred_check_branch
      %74 = sbr.rel (0) target = $region37
    $region36: #{tpu_custom_call.1} parent=1 // pred_region
      %75 = dma.done [#allocation6], 8192
    $region37: #{tpu_custom_call.1} parent=1 // pred_fallthru
      _
    // Predicated region
    $region38: #{tpu_custom_call.1} parent=1 // pred_check
      _
    $region39: #{tpu_custom_call.1} parent=1 // pred_check_branch
      %77 = sbr.rel (0) target = $region41
    $region40: #{tpu_custom_call.1} parent=1 // pred_region
      %78 = dma.done [#allocation6], 8192
    $region41: #{tpu_custom_call.1} parent=1 // pred_fallthru
      _
    // Predicated region
    $region42: #{tpu_custom_call.1} parent=1 // pred_check
      _
    $region43: #{tpu_custom_call.1} parent=1 // pred_check_branch
      %80 = sbr.rel (0) target = $region45
    $region44: #{tpu_custom_call.1} parent=1 // pred_region
      %81 = dma.done [#allocation9], 8192
    $region45: #{tpu_custom_call.1} parent=1 // pred_fallthru
      _
    %v82 = vld [vmem:[#allocation2] sm:$0xff]
    %v83 = vld [vmem:[#allocation2 + $0x8] sm:$0xff]
    %v84 = vld [vmem:[#allocation2 + $0x10] sm:$0xff]
    %v85 = vld [vmem:[#allocation2 + $0x18] sm:$0xff]
    %v86 = vld [vmem:[#allocation5] sm:$0xff]
    %v87 = vld [vmem:[#allocation5 + $0x8] sm:$0xff]
    %v88 = vld [vmem:[#allocation5 + $0x10] sm:$0xff]
    %v89 = vld [vmem:[#allocation5 + $0x18] sm:$0xff]
    %v90 = vld [vmem:[#allocation5 + $0x20] sm:$0xff]
    %v91 = vld [vmem:[#allocation5 + $0x28] sm:$0xff]
    %v92 = vld [vmem:[#allocation5 + $0x30] sm:$0xff]
    %v93 = vld [vmem:[#allocation5 + $0x38] sm:$0xff]
    %v94 = vld [vmem:[#allocation5 + $0x40] sm:$0xff]
    %v95 = vld [vmem:[#allocation5 + $0x48] sm:$0xff]
    %v96 = vld [vmem:[#allocation5 + $0x50] sm:$0xff]
    %v97 = vld [vmem:[#allocation5 + $0x58] sm:$0xff]
    %v98 = vld [vmem:[#allocation5 + $0x60] sm:$0xff]
    %v99 = vld [vmem:[#allocation5 + $0x68] sm:$0xff]
    %v100 = vld [vmem:[#allocation5 + $0x70] sm:$0xff]
    %v101 = vld [vmem:[#allocation5 + $0x78] sm:$0xff]
    %v102 = vld [vmem:[#allocation5 + $0x80] sm:$0xff]
    %v103 = vld [vmem:[#allocation5 + $0x88] sm:$0xff]
    %v104 = vld [vmem:[#allocation5 + $0x90] sm:$0xff]
    %v105 = vld [vmem:[#allocation5 + $0x98] sm:$0xff]
    %v106 = vld [vmem:[#allocation5 + $0xa0] sm:$0xff]
    %v107 = vld [vmem:[#allocation5 + $0xa8] sm:$0xff]
    %v108 = vld [vmem:[#allocation5 + $0xb0] sm:$0xff]
    %v109 = vld [vmem:[#allocation5 + $0xb8] sm:$0xff]
    %v110 = vld [vmem:[#allocation5 + $0xc0] sm:$0xff]
    %v111 = vld [vmem:[#allocation5 + $0xc8] sm:$0xff]
    %v112 = vld [vmem:[#allocation5 + $0xd0] sm:$0xff]
    %v113 = vld [vmem:[#allocation5 + $0xd8] sm:$0xff]
    %v114 = vld [vmem:[#allocation5 + $0xe0] sm:$0xff]
    %v115 = vld [vmem:[#allocation5 + $0xe8] sm:$0xff]
    %v116 = vld [vmem:[#allocation5 + $0xf0] sm:$0xff]
    %v117 = vld [vmem:[#allocation5 + $0xf8] sm:$0xff]
    %v118 = vld [vmem:[#allocation5 + $0x100] sm:$0xff]
    %v119 = vld [vmem:[#allocation5 + $0x108] sm:$0xff]
    %v120 = vld [vmem:[#allocation5 + $0x110] sm:$0xff]
    %v121 = vld [vmem:[#allocation5 + $0x118] sm:$0xff]
    %v122 = vld [vmem:[#allocation5 + $0x120] sm:$0xff]
    %v123 = vld [vmem:[#allocation5 + $0x128] sm:$0xff]
    %v124 = vld [vmem:[#allocation5 + $0x130] sm:$0xff]
    %v125 = vld [vmem:[#allocation5 + $0x138] sm:$0xff]
    %v126 = vld [vmem:[#allocation5 + $0x140] sm:$0xff]
    %v127 = vld [vmem:[#allocation5 + $0x148] sm:$0xff]
    %v128 = vld [vmem:[#allocation5 + $0x150] sm:$0xff]
    %v129 = vld [vmem:[#allocation5 + $0x158] sm:$0xff]
    %v130 = vld [vmem:[#allocation5 + $0x160] sm:$0xff]
    %v131 = vld [vmem:[#allocation5 + $0x168] sm:$0xff]
    %v132 = vld [vmem:[#allocation5 + $0x170] sm:$0xff]
    %v133 = vld [vmem:[#allocation5 + $0x178] sm:$0xff]
    %v134 = vld [vmem:[#allocation5 + $0x180] sm:$0xff]
    %v135 = vld [vmem:[#allocation5 + $0x188] sm:$0xff]
    %v136 = vld [vmem:[#allocation5 + $0x190] sm:$0xff]
    %v137 = vld [vmem:[#allocation5 + $0x198] sm:$0xff]
    %v138 = vld [vmem:[#allocation5 + $0x1a0] sm:$0xff]
    %v139 = vld [vmem:[#allocation5 + $0x1a8] sm:$0xff]
    %v140 = vld [vmem:[#allocation5 + $0x1b0] sm:$0xff]
    %v141 = vld [vmem:[#allocation5 + $0x1b8] sm:$0xff]
    %v142 = vld [vmem:[#allocation5 + $0x1c0] sm:$0xff]
    %v143 = vld [vmem:[#allocation5 + $0x1c8] sm:$0xff]
    %v144 = vld [vmem:[#allocation5 + $0x1d0] sm:$0xff]
    %v145 = vld [vmem:[#allocation5 + $0x1d8] sm:$0xff]
    %v146 = vld [vmem:[#allocation5 + $0x1e0] sm:$0xff]
    %v147 = vld [vmem:[#allocation5 + $0x1e8] sm:$0xff]
    %v148 = vld [vmem:[#allocation5 + $0x1f0] sm:$0xff]
    %v149 = vld [vmem:[#allocation5 + $0x1f8] sm:$0xff]
    %v150 = vld [vmem:[%s2] sm:$0xf]
    %v152 = vlaneseq
    %v153 = vshrl.u32 %v152, 7
    %v154 = vsub.s32 0, %v153
    %v155 = vrot.slane %v150, %v154
    %v156 = vlaneseq
    %v157 = vshrl.u32 %v156, 7
    %v158 = vsub.s32 1, %v157
    %v159 = vrot.slane %v150, %v158
    %v160 = vlaneseq
    %v161 = vshrl.u32 %v160, 7
    %v162 = vsub.s32 2, %v161
    %v163 = vrot.slane %v150, %v162
    %v164 = vlaneseq
    %v165 = vshrl.u32 %v164, 7
    %v166 = vsub.s32 3, %v165
    %v167 = vrot.slane %v150, %v166
    %v176 = vunpack.c.l.b16 %v82
    %v177 = vunpack.c.h.b16 %v82
    %v178 = vunpack.c.l.b16 %v83
    %v179 = vunpack.c.h.b16 %v83
    %v180 = vunpack.c.l.b16 %v84
    %v181 = vunpack.c.h.b16 %v84
    %v182 = vunpack.c.l.b16 %v85
    %v183 = vunpack.c.h.b16 %v85
    %v184 = vpack.c.b16 %v178, %v176
    %v185 = vpack.c.b16 %v179, %v177
    %v186 = vpack.c.b16 %v182, %v180
    %v187 = vpack.c.b16 %v183, %v181
    %v256 = vunpack.c.l.b16 %v86
    %v257 = vunpack.c.h.b16 %v86
    %v258 = vunpack.c.l.b16 %v87
    %v259 = vunpack.c.h.b16 %v87
    %v260 = vunpack.c.l.b16 %v88
    %v261 = vunpack.c.h.b16 %v88
    %v262 = vunpack.c.l.b16 %v89
    %v263 = vunpack.c.h.b16 %v89
    %v264 = vunpack.c.l.b16 %v90
    %v265 = vunpack.c.h.b16 %v90
    %v266 = vunpack.c.l.b16 %v91
    %v267 = vunpack.c.h.b16 %v91
    %v268 = vunpack.c.l.b16 %v92
    %v269 = vunpack.c.h.b16 %v92
    %v270 = vunpack.c.l.b16 %v93
    %v271 = vunpack.c.h.b16 %v93
    %v272 = vunpack.c.l.b16 %v94
    %v273 = vunpack.c.h.b16 %v94
    %v274 = vunpack.c.l.b16 %v95
    %v275 = vunpack.c.h.b16 %v95
    %v276 = vunpack.c.l.b16 %v96
    %v277 = vunpack.c.h.b16 %v96
    %v278 = vunpack.c.l.b16 %v97
    %v279 = vunpack.c.h.b16 %v97
    %v280 = vunpack.c.l.b16 %v98
    %v281 = vunpack.c.h.b16 %v98
    %v282 = vunpack.c.l.b16 %v99
    %v283 = vunpack.c.h.b16 %v99
    %v284 = vunpack.c.l.b16 %v100
    %v285 = vunpack.c.h.b16 %v100
    %v286 = vunpack.c.l.b16 %v101
    %v287 = vunpack.c.h.b16 %v101
    %v288 = vunpack.c.l.b16 %v102
    %v289 = vunpack.c.h.b16 %v102
    %v290 = vunpack.c.l.b16 %v103
    %v291 = vunpack.c.h.b16 %v103
    %v292 = vunpack.c.l.b16 %v104
    %v293 = vunpack.c.h.b16 %v104
    %v294 = vunpack.c.l.b16 %v105
    %v295 = vunpack.c.h.b16 %v105
    %v296 = vunpack.c.l.b16 %v106
    %v297 = vunpack.c.h.b16 %v106
    %v298 = vunpack.c.l.b16 %v107
    %v299 = vunpack.c.h.b16 %v107
    %v300 = vunpack.c.l.b16 %v108
    %v301 = vunpack.c.h.b16 %v108
    %v302 = vunpack.c.l.b16 %v109
    %v303 = vunpack.c.h.b16 %v109
    %v304 = vunpack.c.l.b16 %v110
    %v305 = vunpack.c.h.b16 %v110
    %v306 = vunpack.c.l.b16 %v111
    %v307 = vunpack.c.h.b16 %v111
    %v308 = vunpack.c.l.b16 %v112
    %v309 = vunpack.c.h.b16 %v112
    %v310 = vunpack.c.l.b16 %v113
    %v311 = vunpack.c.h.b16 %v113
    %v312 = vunpack.c.l.b16 %v114
    %v313 = vunpack.c.h.b16 %v114
    %v314 = vunpack.c.l.b16 %v115
    %v315 = vunpack.c.h.b16 %v115
    %v316 = vunpack.c.l.b16 %v116
    %v317 = vunpack.c.h.b16 %v116
    %v318 = vunpack.c.l.b16 %v117
    %v319 = vunpack.c.h.b16 %v117
    %v320 = vunpack.c.l.b16 %v118
    %v321 = vunpack.c.h.b16 %v118
    %v322 = vunpack.c.l.b16 %v119
    %v323 = vunpack.c.h.b16 %v119
    %v324 = vunpack.c.l.b16 %v120
    %v325 = vunpack.c.h.b16 %v120
    %v326 = vunpack.c.l.b16 %v121
    %v327 = vunpack.c.h.b16 %v121
    %v328 = vunpack.c.l.b16 %v122
    %v329 = vunpack.c.h.b16 %v122
    %v330 = vunpack.c.l.b16 %v123
    %v331 = vunpack.c.h.b16 %v123
    %v332 = vunpack.c.l.b16 %v124
    %v333 = vunpack.c.h.b16 %v124
    %v334 = vunpack.c.l.b16 %v125
    %v335 = vunpack.c.h.b16 %v125
    %v336 = vunpack.c.l.b16 %v126
    %v337 = vunpack.c.h.b16 %v126
    %v338 = vunpack.c.l.b16 %v127
    %v339 = vunpack.c.h.b16 %v127
    %v340 = vunpack.c.l.b16 %v128
    %v341 = vunpack.c.h.b16 %v128
    %v342 = vunpack.c.l.b16 %v129
    %v343 = vunpack.c.h.b16 %v129
    %v344 = vunpack.c.l.b16 %v130
    %v345 = vunpack.c.h.b16 %v130
    %v346 = vunpack.c.l.b16 %v131
    %v347 = vunpack.c.h.b16 %v131
    %v348 = vunpack.c.l.b16 %v132
    %v349 = vunpack.c.h.b16 %v132
    %v350 = vunpack.c.l.b16 %v133
    %v351 = vunpack.c.h.b16 %v133
    %v352 = vunpack.c.l.b16 %v134
    %v353 = vunpack.c.h.b16 %v134
    %v354 = vunpack.c.l.b16 %v135
    %v355 = vunpack.c.h.b16 %v135
    %v356 = vunpack.c.l.b16 %v136
    %v357 = vunpack.c.h.b16 %v136
    %v358 = vunpack.c.l.b16 %v137
    %v359 = vunpack.c.h.b16 %v137
    %v360 = vunpack.c.l.b16 %v138
    %v361 = vunpack.c.h.b16 %v138
    %v362 = vunpack.c.l.b16 %v139
    %v363 = vunpack.c.h.b16 %v139
    %v364 = vunpack.c.l.b16 %v140
    %v365 = vunpack.c.h.b16 %v140
    %v366 = vunpack.c.l.b16 %v141
    %v367 = vunpack.c.h.b16 %v141
    %v368 = vunpack.c.l.b16 %v142
    %v369 = vunpack.c.h.b16 %v142
    %v370 = vunpack.c.l.b16 %v143
    %v371 = vunpack.c.h.b16 %v143
    %v372 = vunpack.c.l.b16 %v144
    %v373 = vunpack.c.h.b16 %v144
    %v374 = vunpack.c.l.b16 %v145
    %v375 = vunpack.c.h.b16 %v145
    %v376 = vunpack.c.l.b16 %v146
    %v377 = vunpack.c.h.b16 %v146
    %v378 = vunpack.c.l.b16 %v147
    %v379 = vunpack.c.h.b16 %v147
    %v380 = vunpack.c.l.b16 %v148
    %v381 = vunpack.c.h.b16 %v148
    %v382 = vunpack.c.l.b16 %v149
    %v383 = vunpack.c.h.b16 %v149
    %v384 = vpack.c.b16 %v260, %v256
    %v385 = vpack.c.b16 %v261, %v257
    %v386 = vpack.c.b16 %v262, %v258
    %v387 = vpack.c.b16 %v263, %v259
    %v388 = vpack.c.b16 %v268, %v264
    %v389 = vpack.c.b16 %v269, %v265
    %v390 = vpack.c.b16 %v270, %v266
    %v391 = vpack.c.b16 %v271, %v267
    %v392 = vpack.c.b16 %v276, %v272
    %v393 = vpack.c.b16 %v277, %v273
    %v394 = vpack.c.b16 %v278, %v274
    %v395 = vpack.c.b16 %v279, %v275
    %v396 = vpack.c.b16 %v284, %v280
    %v397 = vpack.c.b16 %v285, %v281
    %v398 = vpack.c.b16 %v286, %v282
    %v399 = vpack.c.b16 %v287, %v283
    %v400 = vpack.c.b16 %v292, %v288
    %v401 = vpack.c.b16 %v293, %v289
    %v402 = vpack.c.b16 %v294, %v290
    %v403 = vpack.c.b16 %v295, %v291
    %v404 = vpack.c.b16 %v300, %v296
    %v405 = vpack.c.b16 %v301, %v297
    %v406 = vpack.c.b16 %v302, %v298
    %v407 = vpack.c.b16 %v303, %v299
    %v408 = vpack.c.b16 %v308, %v304
    %v409 = vpack.c.b16 %v309, %v305
    %v410 = vpack.c.b16 %v310, %v306
    %v411 = vpack.c.b16 %v311, %v307
    %v412 = vpack.c.b16 %v316, %v312
    %v413 = vpack.c.b16 %v317, %v313
    %v414 = vpack.c.b16 %v318, %v314
    %v415 = vpack.c.b16 %v319, %v315
    %v416 = vpack.c.b16 %v324, %v320
    %v417 = vpack.c.b16 %v325, %v321
    %v418 = vpack.c.b16 %v326, %v322
    %v419 = vpack.c.b16 %v327, %v323
    %v420 = vpack.c.b16 %v332, %v328
    %v421 = vpack.c.b16 %v333, %v329
    %v422 = vpack.c.b16 %v334, %v330
    %v423 = vpack.c.b16 %v335, %v331
    %v424 = vpack.c.b16 %v340, %v336
    %v425 = vpack.c.b16 %v341, %v337
    %v426 = vpack.c.b16 %v342, %v338
    %v427 = vpack.c.b16 %v343, %v339
    %v428 = vpack.c.b16 %v348, %v344
    %v429 = vpack.c.b16 %v349, %v345
    %v430 = vpack.c.b16 %v350, %v346
    %v431 = vpack.c.b16 %v351, %v347
    %v432 = vpack.c.b16 %v356, %v352
    %v433 = vpack.c.b16 %v357, %v353
    %v434 = vpack.c.b16 %v358, %v354
    %v435 = vpack.c.b16 %v359, %v355
    %v436 = vpack.c.b16 %v364, %v360
    %v437 = vpack.c.b16 %v365, %v361
    %v438 = vpack.c.b16 %v366, %v362
    %v439 = vpack.c.b16 %v367, %v363
    %v440 = vpack.c.b16 %v372, %v368
    %v441 = vpack.c.b16 %v373, %v369
    %v442 = vpack.c.b16 %v374, %v370
    %v443 = vpack.c.b16 %v375, %v371
    %v444 = vpack.c.b16 %v380, %v376
    %v445 = vpack.c.b16 %v381, %v377
    %v446 = vpack.c.b16 %v382, %v378
    %v447 = vpack.c.b16 %v383, %v379
    %512 = vmatprep.subr.bf16.mxu0 %v385
    %513 = vmatpush1.bf16.msra.mxu0 %v384
    %514 = vmatprep.subr.bf16.mxu0 %v389
    %515 = vmatpush1.bf16.msra.mxu0 %v388
    %516 = vmatprep.subr.bf16.mxu0 %v393
    %517 = vmatpush1.bf16.msra.mxu0 %v392
    %518 = vmatprep.subr.bf16.mxu0 %v397
    %519 = vmatpush1.bf16.msra.mxu0 %v396
    %520 = vmatprep.subr.bf16.mxu0 %v401
    %521 = vmatpush1.bf16.msra.mxu0 %v400
    %522 = vmatprep.subr.bf16.mxu0 %v405
    %523 = vmatpush1.bf16.msra.mxu0 %v404
    %524 = vmatprep.subr.bf16.mxu0 %v409
    %525 = vmatpush1.bf16.msra.mxu0 %v408
    %526 = vmatprep.subr.bf16.mxu0 %v413
    %527 = vmatpush1.bf16.msra.mxu0 %v412
    %528 = vmatprep.subr.bf16.mxu0 %v417
    %529 = vmatpush1.bf16.msra.mxu0 %v416
    %530 = vmatprep.subr.bf16.mxu0 %v421
    %531 = vmatpush1.bf16.msra.mxu0 %v420
    %532 = vmatprep.subr.bf16.mxu0 %v425
    %533 = vmatpush1.bf16.msra.mxu0 %v424
    %534 = vmatprep.subr.bf16.mxu0 %v429
    %535 = vmatpush1.bf16.msra.mxu0 %v428
    %536 = vmatprep.subr.bf16.mxu0 %v433
    %537 = vmatpush1.bf16.msra.mxu0 %v432
    %538 = vmatprep.subr.bf16.mxu0 %v437
    %539 = vmatpush1.bf16.msra.mxu0 %v436
    %540 = vmatprep.subr.bf16.mxu0 %v441
    %541 = vmatpush1.bf16.msra.mxu0 %v440
    %542 = vmatprep.subr.bf16.mxu0 %v445
    %543 = vmatpush1.bf16.msra.mxu0 %v444
    %544 = vmatprep.mubr.bf16.mxu0 %v185
    %545 = vmatmul.mubr.bf16.gmra.mrb[0].mxu0 %v184
    %v546 = vpop.f32.mrb[0].mxu0
    %v547 = vadd.f32 %v155, %v546
    %v548 = vpop.f32.mrb[0].mxu0
    %v549 = vadd.f32 %v159, %v548
    %v550 = vpop.f32.mrb[0].mxu0
    %v551 = vadd.f32 %v155, %v550
    %v552 = vpop.f32.mrb[0].mxu0
    %v553 = vadd.f32 %v159, %v552
    %554 = vmatprep.mubr.bf16.mxu0 %v187
    %555 = vmatmul.mubr.bf16.gmra.mrb[0].mxu0 %v186
    %v556 = vpop.f32.mrb[0].mxu0
    %v557 = vadd.f32 %v155, %v556
    %v558 = vpop.f32.mrb[0].mxu0
    %v559 = vadd.f32 %v159, %v558
    %v560 = vpop.f32.mrb[0].mxu0
    %v561 = vadd.f32 %v155, %v560
    %v562 = vpop.f32.mrb[0].mxu0
    %v563 = vadd.f32 %v159, %v562
    %564 = vdwg.mxu0
    %565 = vmatprep.subr.bf16.mxu0 %v387
    %566 = vmatpush1.bf16.msra.mxu0 %v386
    %567 = vmatprep.subr.bf16.mxu0 %v391
    %568 = vmatpush1.bf16.msra.mxu0 %v390
    %569 = vmatprep.subr.bf16.mxu0 %v395
    %570 = vmatpush1.bf16.msra.mxu0 %v394
    %571 = vmatprep.subr.bf16.mxu0 %v399
    %572 = vmatpush1.bf16.msra.mxu0 %v398
    %573 = vmatprep.subr.bf16.mxu0 %v403
    %574 = vmatpush1.bf16.msra.mxu0 %v402
    %575 = vmatprep.subr.bf16.mxu0 %v407
    %576 = vmatpush1.bf16.msra.mxu0 %v406
    %577 = vmatprep.subr.bf16.mxu0 %v411
    %578 = vmatpush1.bf16.msra.mxu0 %v410
    %579 = vmatprep.subr.bf16.mxu0 %v415
    %580 = vmatpush1.bf16.msra.mxu0 %v414
    %581 = vmatprep.subr.bf16.mxu0 %v419
    %582 = vmatpush1.bf16.msra.mxu0 %v418
    %583 = vmatprep.subr.bf16.mxu0 %v423
    %584 = vmatpush1.bf16.msra.mxu0 %v422
    %585 = vmatprep.subr.bf16.mxu0 %v427
    %586 = vmatpush1.bf16.msra.mxu0 %v426
    %587 = vmatprep.subr.bf16.mxu0 %v431
    %588 = vmatpush1.bf16.msra.mxu0 %v430
    %589 = vmatprep.subr.bf16.mxu0 %v435
    %590 = vmatpush1.bf16.msra.mxu0 %v434
    %591 = vmatprep.subr.bf16.mxu0 %v439
    %592 = vmatpush1.bf16.msra.mxu0 %v438
    %593 = vmatprep.subr.bf16.mxu0 %v443
    %594 = vmatpush1.bf16.msra.mxu0 %v442
    %595 = vmatprep.subr.bf16.mxu0 %v447
    %596 = vmatpush1.bf16.msra.mxu0 %v446
    %597 = vmatprep.mubr.bf16.mxu0 %v185
    %598 = vmatmul.mubr.bf16.gmra.mrb[0].mxu0 %v184
    %v599 = vpop.f32.mrb[0].mxu0
    %v600 = vadd.f32 %v163, %v599
    %v601 = vpop.f32.mrb[0].mxu0
    %v602 = vadd.f32 %v167, %v601
    %v603 = vpop.f32.mrb[0].mxu0
    %v604 = vadd.f32 %v163, %v603
    %v605 = vpop.f32.mrb[0].mxu0
    %v606 = vadd.f32 %v167, %v605
    %607 = vmatprep.mubr.bf16.mxu0 %v187
    %608 = vmatmul.mubr.bf16.gmra.mrb[0].mxu0 %v186
    %v609 = vpop.f32.mrb[0].mxu0
    %v610 = vadd.f32 %v163, %v609
    %v611 = vpop.f32.mrb[0].mxu0
    %v612 = vadd.f32 %v167, %v611
    %v613 = vpop.f32.mrb[0].mxu0
    %v614 = vadd.f32 %v163, %v613
    %v615 = vpop.f32.mrb[0].mxu0
    %v616 = vadd.f32 %v167, %v615
    %617 = vdwg.mxu0
    %v618 = vld [vmem:[#allocation7] sm:$0xff]
    %v619 = vld [vmem:[#allocation7 + $0x8] sm:$0xff]
    %v620 = vld [vmem:[#allocation7 + $0x10] sm:$0xff]
    %v621 = vld [vmem:[#allocation7 + $0x18] sm:$0xff]
    %v622 = vld [vmem:[#allocation7 + $0x20] sm:$0xff]
    %v623 = vld [vmem:[#allocation7 + $0x28] sm:$0xff]
    %v624 = vld [vmem:[#allocation7 + $0x30] sm:$0xff]
    %v625 = vld [vmem:[#allocation7 + $0x38] sm:$0xff]
    %v626 = vld [vmem:[#allocation7 + $0x40] sm:$0xff]
    %v627 = vld [vmem:[#allocation7 + $0x48] sm:$0xff]
    %v628 = vld [vmem:[#allocation7 + $0x50] sm:$0xff]
    %v629 = vld [vmem:[#allocation7 + $0x58] sm:$0xff]
    %v630 = vld [vmem:[#allocation7 + $0x60] sm:$0xff]
    %v631 = vld [vmem:[#allocation7 + $0x68] sm:$0xff]
    %v632 = vld [vmem:[#allocation7 + $0x70] sm:$0xff]
    %v633 = vld [vmem:[#allocation7 + $0x78] sm:$0xff]
    %v634 = vld [vmem:[#allocation7 + $0x80] sm:$0xff]
    %v635 = vld [vmem:[#allocation7 + $0x88] sm:$0xff]
    %v636 = vld [vmem:[#allocation7 + $0x90] sm:$0xff]
    %v637 = vld [vmem:[#allocation7 + $0x98] sm:$0xff]
    %v638 = vld [vmem:[#allocation7 + $0xa0] sm:$0xff]
    %v639 = vld [vmem:[#allocation7 + $0xa8] sm:$0xff]
    %v640 = vld [vmem:[#allocation7 + $0xb0] sm:$0xff]
    %v641 = vld [vmem:[#allocation7 + $0xb8] sm:$0xff]
    %v642 = vld [vmem:[#allocation7 + $0xc0] sm:$0xff]
    %v643 = vld [vmem:[#allocation7 + $0xc8] sm:$0xff]
    %v644 = vld [vmem:[#allocation7 + $0xd0] sm:$0xff]
    %v645 = vld [vmem:[#allocation7 + $0xd8] sm:$0xff]
    %v646 = vld [vmem:[#allocation7 + $0xe0] sm:$0xff]
    %v647 = vld [vmem:[#allocation7 + $0xe8] sm:$0xff]
    %v648 = vld [vmem:[#allocation7 + $0xf0] sm:$0xff]
    %v649 = vld [vmem:[#allocation7 + $0xf8] sm:$0xff]
    %v650 = vld [vmem:[#allocation7 + $0x100] sm:$0xff]
    %v651 = vld [vmem:[#allocation7 + $0x108] sm:$0xff]
    %v652 = vld [vmem:[#allocation7 + $0x110] sm:$0xff]
    %v653 = vld [vmem:[#allocation7 + $0x118] sm:$0xff]
    %v654 = vld [vmem:[#allocation7 + $0x120] sm:$0xff]
    %v655 = vld [vmem:[#allocation7 + $0x128] sm:$0xff]
    %v656 = vld [vmem:[#allocation7 + $0x130] sm:$0xff]
    %v657 = vld [vmem:[#allocation7 + $0x138] sm:$0xff]
    %v658 = vld [vmem:[#allocation7 + $0x140] sm:$0xff]
    %v659 = vld [vmem:[#allocation7 + $0x148] sm:$0xff]
    %v660 = vld [vmem:[#allocation7 + $0x150] sm:$0xff]
    %v661 = vld [vmem:[#allocation7 + $0x158] sm:$0xff]
    %v662 = vld [vmem:[#allocation7 + $0x160] sm:$0xff]
    %v663 = vld [vmem:[#allocation7 + $0x168] sm:$0xff]
    %v664 = vld [vmem:[#allocation7 + $0x170] sm:$0xff]
    %v665 = vld [vmem:[#allocation7 + $0x178] sm:$0xff]
    %v666 = vld [vmem:[#allocation7 + $0x180] sm:$0xff]
    %v667 = vld [vmem:[#allocation7 + $0x188] sm:$0xff]
    %v668 = vld [vmem:[#allocation7 + $0x190] sm:$0xff]
    %v669 = vld [vmem:[#allocation7 + $0x198] sm:$0xff]
    %v670 = vld [vmem:[#allocation7 + $0x1a0] sm:$0xff]
    %v671 = vld [vmem:[#allocation7 + $0x1a8] sm:$0xff]
    %v672 = vld [vmem:[#allocation7 + $0x1b0] sm:$0xff]
    %v673 = vld [vmem:[#allocation7 + $0x1b8] sm:$0xff]
    %v674 = vld [vmem:[#allocation7 + $0x1c0] sm:$0xff]
    %v675 = vld [vmem:[#allocation7 + $0x1c8] sm:$0xff]
    %v676 = vld [vmem:[#allocation7 + $0x1d0] sm:$0xff]
    %v677 = vld [vmem:[#allocation7 + $0x1d8] sm:$0xff]
    %v678 = vld [vmem:[#allocation7 + $0x1e0] sm:$0xff]
    %v679 = vld [vmem:[#allocation7 + $0x1e8] sm:$0xff]
    %v680 = vld [vmem:[#allocation7 + $0x1f0] sm:$0xff]
    %v681 = vld [vmem:[#allocation7 + $0x1f8] sm:$0xff]
    %v682 = vld [vmem:[%s4] sm:$0xf]
    %v684 = vlaneseq
    %v685 = vshrl.u32 %v684, 7
    %v686 = vsub.s32 0, %v685
    %v687 = vrot.slane %v682, %v686
    %v688 = vlaneseq
    %v689 = vshrl.u32 %v688, 7
    %v690 = vsub.s32 1, %v689
    %v691 = vrot.slane %v682, %v690
    %v692 = vlaneseq
    %v693 = vshrl.u32 %v692, 7
    %v694 = vsub.s32 2, %v693
    %v695 = vrot.slane %v682, %v694
    %v696 = vlaneseq
    %v697 = vshrl.u32 %v696, 7
    %v698 = vsub.s32 3, %v697
    %v699 = vrot.slane %v682, %v698
    %v768 = vunpack.c.l.b16 %v618
    %v769 = vunpack.c.h.b16 %v618
    %v770 = vunpack.c.l.b16 %v619
    %v771 = vunpack.c.h.b16 %v619
    %v772 = vunpack.c.l.b16 %v620
    %v773 = vunpack.c.h.b16 %v620
    %v774 = vunpack.c.l.b16 %v621
    %v775 = vunpack.c.h.b16 %v621
    %v776 = vunpack.c.l.b16 %v622
    %v777 = vunpack.c.h.b16 %v622
    %v778 = vunpack.c.l.b16 %v623
    %v779 = vunpack.c.h.b16 %v623
    %v780 = vunpack.c.l.b16 %v624
    %v781 = vunpack.c.h.b16 %v624
    %v782 = vunpack.c.l.b16 %v625
    %v783 = vunpack.c.h.b16 %v625
    %v784 = vunpack.c.l.b16 %v626
    %v785 = vunpack.c.h.b16 %v626
    %v786 = vunpack.c.l.b16 %v627
    %v787 = vunpack.c.h.b16 %v627
    %v788 = vunpack.c.l.b16 %v628
    %v789 = vunpack.c.h.b16 %v628
    %v790 = vunpack.c.l.b16 %v629
    %v791 = vunpack.c.h.b16 %v629
    %v792 = vunpack.c.l.b16 %v630
    %v793 = vunpack.c.h.b16 %v630
    %v794 = vunpack.c.l.b16 %v631
    %v795 = vunpack.c.h.b16 %v631
    %v796 = vunpack.c.l.b16 %v632
    %v797 = vunpack.c.h.b16 %v632
    %v798 = vunpack.c.l.b16 %v633
    %v799 = vunpack.c.h.b16 %v633
    %v800 = vunpack.c.l.b16 %v634
    %v801 = vunpack.c.h.b16 %v634
    %v802 = vunpack.c.l.b16 %v635
    %v803 = vunpack.c.h.b16 %v635
    %v804 = vunpack.c.l.b16 %v636
    %v805 = vunpack.c.h.b16 %v636
    %v806 = vunpack.c.l.b16 %v637
    %v807 = vunpack.c.h.b16 %v637
    %v808 = vunpack.c.l.b16 %v638
    %v809 = vunpack.c.h.b16 %v638
    %v810 = vunpack.c.l.b16 %v639
    %v811 = vunpack.c.h.b16 %v639
    %v812 = vunpack.c.l.b16 %v640
    %v813 = vunpack.c.h.b16 %v640
    %v814 = vunpack.c.l.b16 %v641
    %v815 = vunpack.c.h.b16 %v641
    %v816 = vunpack.c.l.b16 %v642
    %v817 = vunpack.c.h.b16 %v642
    %v818 = vunpack.c.l.b16 %v643
    %v819 = vunpack.c.h.b16 %v643
    %v820 = vunpack.c.l.b16 %v644
    %v821 = vunpack.c.h.b16 %v644
    %v822 = vunpack.c.l.b16 %v645
    %v823 = vunpack.c.h.b16 %v645
    %v824 = vunpack.c.l.b16 %v646
    %v825 = vunpack.c.h.b16 %v646
    %v826 = vunpack.c.l.b16 %v647
    %v827 = vunpack.c.h.b16 %v647
    %v828 = vunpack.c.l.b16 %v648
    %v829 = vunpack.c.h.b16 %v648
    %v830 = vunpack.c.l.b16 %v649
    %v831 = vunpack.c.h.b16 %v649
    %v832 = vunpack.c.l.b16 %v650
    %v833 = vunpack.c.h.b16 %v650
    %v834 = vunpack.c.l.b16 %v651
    %v835 = vunpack.c.h.b16 %v651
    %v836 = vunpack.c.l.b16 %v652
    %v837 = vunpack.c.h.b16 %v652
    %v838 = vunpack.c.l.b16 %v653
    %v839 = vunpack.c.h.b16 %v653
    %v840 = vunpack.c.l.b16 %v654
    %v841 = vunpack.c.h.b16 %v654
    %v842 = vunpack.c.l.b16 %v655
    %v843 = vunpack.c.h.b16 %v655
    %v844 = vunpack.c.l.b16 %v656
    %v845 = vunpack.c.h.b16 %v656
    %v846 = vunpack.c.l.b16 %v657
    %v847 = vunpack.c.h.b16 %v657
    %v848 = vunpack.c.l.b16 %v658
    %v849 = vunpack.c.h.b16 %v658
    %v850 = vunpack.c.l.b16 %v659
    %v851 = vunpack.c.h.b16 %v659
    %v852 = vunpack.c.l.b16 %v660
    %v853 = vunpack.c.h.b16 %v660
    %v854 = vunpack.c.l.b16 %v661
    %v855 = vunpack.c.h.b16 %v661
    %v856 = vunpack.c.l.b16 %v662
    %v857 = vunpack.c.h.b16 %v662
    %v858 = vunpack.c.l.b16 %v663
    %v859 = vunpack.c.h.b16 %v663
    %v860 = vunpack.c.l.b16 %v664
    %v861 = vunpack.c.h.b16 %v664
    %v862 = vunpack.c.l.b16 %v665
    %v863 = vunpack.c.h.b16 %v665
    %v864 = vunpack.c.l.b16 %v666
    %v865 = vunpack.c.h.b16 %v666
    %v866 = vunpack.c.l.b16 %v667
    %v867 = vunpack.c.h.b16 %v667
    %v868 = vunpack.c.l.b16 %v668
    %v869 = vunpack.c.h.b16 %v668
    %v870 = vunpack.c.l.b16 %v669
    %v871 = vunpack.c.h.b16 %v669
    %v872 = vunpack.c.l.b16 %v670
    %v873 = vunpack.c.h.b16 %v670
    %v874 = vunpack.c.l.b16 %v671
    %v875 = vunpack.c.h.b16 %v671
    %v876 = vunpack.c.l.b16 %v672
    %v877 = vunpack.c.h.b16 %v672
    %v878 = vunpack.c.l.b16 %v673
    %v879 = vunpack.c.h.b16 %v673
    %v880 = vunpack.c.l.b16 %v674
    %v881 = vunpack.c.h.b16 %v674
    %v882 = vunpack.c.l.b16 %v675
    %v883 = vunpack.c.h.b16 %v675
    %v884 = vunpack.c.l.b16 %v676
    %v885 = vunpack.c.h.b16 %v676
    %v886 = vunpack.c.l.b16 %v677
    %v887 = vunpack.c.h.b16 %v677
    %v888 = vunpack.c.l.b16 %v678
    %v889 = vunpack.c.h.b16 %v678
    %v890 = vunpack.c.l.b16 %v679
    %v891 = vunpack.c.h.b16 %v679
    %v892 = vunpack.c.l.b16 %v680
    %v893 = vunpack.c.h.b16 %v680
    %v894 = vunpack.c.l.b16 %v681
    %v895 = vunpack.c.h.b16 %v681
    %v896 = vpack.c.b16 %v772, %v768
    %v897 = vpack.c.b16 %v773, %v769
    %v898 = vpack.c.b16 %v774, %v770
    %v899 = vpack.c.b16 %v775, %v771
    %v900 = vpack.c.b16 %v780, %v776
    %v901 = vpack.c.b16 %v781, %v777
    %v902 = vpack.c.b16 %v782, %v778
    %v903 = vpack.c.b16 %v783, %v779
    %v904 = vpack.c.b16 %v788, %v784
    %v905 = vpack.c.b16 %v789, %v785
    %v906 = vpack.c.b16 %v790, %v786
    %v907 = vpack.c.b16 %v791, %v787
    %v908 = vpack.c.b16 %v796, %v792
    %v909 = vpack.c.b16 %v797, %v793
    %v910 = vpack.c.b16 %v798, %v794
    %v911 = vpack.c.b16 %v799, %v795
    %v912 = vpack.c.b16 %v804, %v800
    %v913 = vpack.c.b16 %v805, %v801
    %v914 = vpack.c.b16 %v806, %v802
    %v915 = vpack.c.b16 %v807, %v803
    %v916 = vpack.c.b16 %v812, %v808
    %v917 = vpack.c.b16 %v813, %v809
    %v918 = vpack.c.b16 %v814, %v810
    %v919 = vpack.c.b16 %v815, %v811
    %v920 = vpack.c.b16 %v820, %v816
    %v921 = vpack.c.b16 %v821, %v817
    %v922 = vpack.c.b16 %v822, %v818
    %v923 = vpack.c.b16 %v823, %v819
    %v924 = vpack.c.b16 %v828, %v824
    %v925 = vpack.c.b16 %v829, %v825
    %v926 = vpack.c.b16 %v830, %v826
    %v927 = vpack.c.b16 %v831, %v827
    %v928 = vpack.c.b16 %v836, %v832
    %v929 = vpack.c.b16 %v837, %v833
    %v930 = vpack.c.b16 %v838, %v834
    %v931 = vpack.c.b16 %v839, %v835
    %v932 = vpack.c.b16 %v844, %v840
    %v933 = vpack.c.b16 %v845, %v841
    %v934 = vpack.c.b16 %v846, %v842
    %v935 = vpack.c.b16 %v847, %v843
    %v936 = vpack.c.b16 %v852, %v848
    %v937 = vpack.c.b16 %v853, %v849
    %v938 = vpack.c.b16 %v854, %v850
    %v939 = vpack.c.b16 %v855, %v851
    %v940 = vpack.c.b16 %v860, %v856
    %v941 = vpack.c.b16 %v861, %v857
    %v942 = vpack.c.b16 %v862, %v858
    %v943 = vpack.c.b16 %v863, %v859
    %v944 = vpack.c.b16 %v868, %v864
    %v945 = vpack.c.b16 %v869, %v865
    %v946 = vpack.c.b16 %v870, %v866
    %v947 = vpack.c.b16 %v871, %v867
    %v948 = vpack.c.b16 %v876, %v872
    %v949 = vpack.c.b16 %v877, %v873
    %v950 = vpack.c.b16 %v878, %v874
    %v951 = vpack.c.b16 %v879, %v875
    %v952 = vpack.c.b16 %v884, %v880
    %v953 = vpack.c.b16 %v885, %v881
    %v954 = vpack.c.b16 %v886, %v882
    %v955 = vpack.c.b16 %v887, %v883
    %v956 = vpack.c.b16 %v892, %v888
    %v957 = vpack.c.b16 %v893, %v889
    %v958 = vpack.c.b16 %v894, %v890
    %v959 = vpack.c.b16 %v895, %v891
    %1024 = vmatprep.subr.bf16.mxu0 %v897
    %1025 = vmatpush1.bf16.msra.mxu0 %v896
    %1026 = vmatprep.subr.bf16.mxu0 %v901
    %1027 = vmatpush1.bf16.msra.mxu0 %v900
    %1028 = vmatprep.subr.bf16.mxu0 %v905
    %1029 = vmatpush1.bf16.msra.mxu0 %v904
    %1030 = vmatprep.subr.bf16.mxu0 %v909
    %1031 = vmatpush1.bf16.msra.mxu0 %v908
    %1032 = vmatprep.subr.bf16.mxu0 %v913
    %1033 = vmatpush1.bf16.msra.mxu0 %v912
    %1034 = vmatprep.subr.bf16.mxu0 %v917
    %1035 = vmatpush1.bf16.msra.mxu0 %v916
    %1036 = vmatprep.subr.bf16.mxu0 %v921
    %1037 = vmatpush1.bf16.msra.mxu0 %v920
    %1038 = vmatprep.subr.bf16.mxu0 %v925
    %1039 = vmatpush1.bf16.msra.mxu0 %v924
    %1040 = vmatprep.subr.bf16.mxu0 %v929
    %1041 = vmatpush1.bf16.msra.mxu0 %v928
    %1042 = vmatprep.subr.bf16.mxu0 %v933
    %1043 = vmatpush1.bf16.msra.mxu0 %v932
    %1044 = vmatprep.subr.bf16.mxu0 %v937
    %1045 = vmatpush1.bf16.msra.mxu0 %v936
    %1046 = vmatprep.subr.bf16.mxu0 %v941
    %1047 = vmatpush1.bf16.msra.mxu0 %v940
    %1048 = vmatprep.subr.bf16.mxu0 %v945
    %1049 = vmatpush1.bf16.msra.mxu0 %v944
    %1050 = vmatprep.subr.bf16.mxu0 %v949
    %1051 = vmatpush1.bf16.msra.mxu0 %v948
    %1052 = vmatprep.subr.bf16.mxu0 %v953
    %1053 = vmatpush1.bf16.msra.mxu0 %v952
    %1054 = vmatprep.subr.bf16.mxu0 %v957
    %1055 = vmatpush1.bf16.msra.mxu0 %v956
    %1056 = vmatprep.mubr.bf16.mxu0 %v185
    %1057 = vmatmul.mubr.bf16.gmra.mrb[0].mxu0 %v184
    %v1058 = vpop.f32.mrb[0].mxu0
    %v1059 = vadd.f32 %v687, %v1058
    %v1060 = vpop.f32.mrb[0].mxu0
    %v1061 = vadd.f32 %v691, %v1060
    %v1062 = vpop.f32.mrb[0].mxu0
    %v1063 = vadd.f32 %v687, %v1062
    %v1064 = vpop.f32.mrb[0].mxu0
    %v1065 = vadd.f32 %v691, %v1064
    %1066 = vmatprep.mubr.bf16.mxu0 %v187
    %1067 = vmatmul.mubr.bf16.gmra.mrb[0].mxu0 %v186
    %v1068 = vpop.f32.mrb[0].mxu0
    %v1069 = vadd.f32 %v687, %v1068
    %v1070 = vpop.f32.mrb[0].mxu0
    %v1071 = vadd.f32 %v691, %v1070
    %v1072 = vpop.f32.mrb[0].mxu0
    %v1073 = vadd.f32 %v687, %v1072
    %v1074 = vpop.f32.mrb[0].mxu0
    %v1075 = vadd.f32 %v691, %v1074
    %1076 = vdwg.mxu0
    %1077 = vmatprep.subr.bf16.mxu0 %v899
    %1078 = vmatpush1.bf16.msra.mxu0 %v898
    %1079 = vmatprep.subr.bf16.mxu0 %v903
    %1080 = vmatpush1.bf16.msra.mxu0 %v902
    %1081 = vmatprep.subr.bf16.mxu0 %v907
    %1082 = vmatpush1.bf16.msra.mxu0 %v906
    %1083 = vmatprep.subr.bf16.mxu0 %v911
    %1084 = vmatpush1.bf16.msra.mxu0 %v910
    %1085 = vmatprep.subr.bf16.mxu0 %v915
    %1086 = vmatpush1.bf16.msra.mxu0 %v914
    %1087 = vmatprep.subr.bf16.mxu0 %v919
    %1088 = vmatpush1.bf16.msra.mxu0 %v918
    %1089 = vmatprep.subr.bf16.mxu0 %v923
    %1090 = vmatpush1.bf16.msra.mxu0 %v922
    %1091 = vmatprep.subr.bf16.mxu0 %v927
    %1092 = vmatpush1.bf16.msra.mxu0 %v926
    %1093 = vmatprep.subr.bf16.mxu0 %v931
    %1094 = vmatpush1.bf16.msra.mxu0 %v930
    %1095 = vmatprep.subr.bf16.mxu0 %v935
    %1096 = vmatpush1.bf16.msra.mxu0 %v934
    %1097 = vmatprep.subr.bf16.mxu0 %v939
    %1098 = vmatpush1.bf16.msra.mxu0 %v938
    %1099 = vmatprep.subr.bf16.mxu0 %v943
    %1100 = vmatpush1.bf16.msra.mxu0 %v942
    %1101 = vmatprep.subr.bf16.mxu0 %v947
    %1102 = vmatpush1.bf16.msra.mxu0 %v946
    %1103 = vmatprep.subr.bf16.mxu0 %v951
    %1104 = vmatpush1.bf16.msra.mxu0 %v950
    %1105 = vmatprep.subr.bf16.mxu0 %v955
    %1106 = vmatpush1.bf16.msra.mxu0 %v954
    %1107 = vmatprep.subr.bf16.mxu0 %v959
    %1108 = vmatpush1.bf16.msra.mxu0 %v958
    %1109 = vmatprep.mubr.bf16.mxu0 %v185
    %1110 = vmatmul.mubr.bf16.gmra.mrb[0].mxu0 %v184
    %v1111 = vpop.f32.mrb[0].mxu0
    %v1112 = vadd.f32 %v695, %v1111
    %v1113 = vpop.f32.mrb[0].mxu0
    %v1114 = vadd.f32 %v699, %v1113
    %v1115 = vpop.f32.mrb[0].mxu0
    %v1116 = vadd.f32 %v695, %v1115
    %v1117 = vpop.f32.mrb[0].mxu0
    %v1118 = vadd.f32 %v699, %v1117
    %1119 = vmatprep.mubr.bf16.mxu0 %v187
    %1120 = vmatmul.mubr.bf16.gmra.mrb[0].mxu0 %v186
    %v1121 = vpop.f32.mrb[0].mxu0
    %v1122 = vadd.f32 %v695, %v1121
    %v1123 = vpop.f32.mrb[0].mxu0
    %v1124 = vadd.f32 %v699, %v1123
    %v1125 = vpop.f32.mrb[0].mxu0
    %v1126 = vadd.f32 %v695, %v1125
    %v1127 = vpop.f32.mrb[0].mxu0
    %v1128 = vadd.f32 %v699, %v1127
    %1129 = vdwg.mxu0
    %v1130 = vld [vmem:[#allocation8] sm:$0xff]
    %v1131 = vld [vmem:[#allocation8 + $0x8] sm:$0xff]
    %v1132 = vld [vmem:[#allocation8 + $0x10] sm:$0xff]
    %v1133 = vld [vmem:[#allocation8 + $0x18] sm:$0xff]
    %v1134 = vld [vmem:[#allocation8 + $0x20] sm:$0xff]
    %v1135 = vld [vmem:[#allocation8 + $0x28] sm:$0xff]
    %v1136 = vld [vmem:[#allocation8 + $0x30] sm:$0xff]
    %v1137 = vld [vmem:[#allocation8 + $0x38] sm:$0xff]
    %v1138 = vld [vmem:[#allocation8 + $0x40] sm:$0xff]
    %v1139 = vld [vmem:[#allocation8 + $0x48] sm:$0xff]
    %v1140 = vld [vmem:[#allocation8 + $0x50] sm:$0xff]
    %v1141 = vld [vmem:[#allocation8 + $0x58] sm:$0xff]
    %v1142 = vld [vmem:[#allocation8 + $0x60] sm:$0xff]
    %v1143 = vld [vmem:[#allocation8 + $0x68] sm:$0xff]
    %v1144 = vld [vmem:[#allocation8 + $0x70] sm:$0xff]
    %v1145 = vld [vmem:[#allocation8 + $0x78] sm:$0xff]
    %v1146 = vld [vmem:[#allocation8 + $0x80] sm:$0xff]
    %v1147 = vld [vmem:[#allocation8 + $0x88] sm:$0xff]
    %v1148 = vld [vmem:[#allocation8 + $0x90] sm:$0xff]
    %v1149 = vld [vmem:[#allocation8 + $0x98] sm:$0xff]
    %v1150 = vld [vmem:[#allocation8 + $0xa0] sm:$0xff]
    %v1151 = vld [vmem:[#allocation8 + $0xa8] sm:$0xff]
    %v1152 = vld [vmem:[#allocation8 + $0xb0] sm:$0xff]
    %v1153 = vld [vmem:[#allocation8 + $0xb8] sm:$0xff]
    %v1154 = vld [vmem:[#allocation8 + $0xc0] sm:$0xff]
    %v1155 = vld [vmem:[#allocation8 + $0xc8] sm:$0xff]
    %v1156 = vld [vmem:[#allocation8 + $0xd0] sm:$0xff]
    %v1157 = vld [vmem:[#allocation8 + $0xd8] sm:$0xff]
    %v1158 = vld [vmem:[#allocation8 + $0xe0] sm:$0xff]
    %v1159 = vld [vmem:[#allocation8 + $0xe8] sm:$0xff]
    %v1160 = vld [vmem:[#allocation8 + $0xf0] sm:$0xff]
    %v1161 = vld [vmem:[#allocation8 + $0xf8] sm:$0xff]
    %v1162 = vld [vmem:[#allocation8 + $0x100] sm:$0xff]
    %v1163 = vld [vmem:[#allocation8 + $0x108] sm:$0xff]
    %v1164 = vld [vmem:[#allocation8 + $0x110] sm:$0xff]
    %v1165 = vld [vmem:[#allocation8 + $0x118] sm:$0xff]
    %v1166 = vld [vmem:[#allocation8 + $0x120] sm:$0xff]
    %v1167 = vld [vmem:[#allocation8 + $0x128] sm:$0xff]
    %v1168 = vld [vmem:[#allocation8 + $0x130] sm:$0xff]
    %v1169 = vld [vmem:[#allocation8 + $0x138] sm:$0xff]
    %v1170 = vld [vmem:[#allocation8 + $0x140] sm:$0xff]
    %v1171 = vld [vmem:[#allocation8 + $0x148] sm:$0xff]
    %v1172 = vld [vmem:[#allocation8 + $0x150] sm:$0xff]
    %v1173 = vld [vmem:[#allocation8 + $0x158] sm:$0xff]
    %v1174 = vld [vmem:[#allocation8 + $0x160] sm:$0xff]
    %v1175 = vld [vmem:[#allocation8 + $0x168] sm:$0xff]
    %v1176 = vld [vmem:[#allocation8 + $0x170] sm:$0xff]
    %v1177 = vld [vmem:[#allocation8 + $0x178] sm:$0xff]
    %v1178 = vld [vmem:[#allocation8 + $0x180] sm:$0xff]
    %v1179 = vld [vmem:[#allocation8 + $0x188] sm:$0xff]
    %v1180 = vld [vmem:[#allocation8 + $0x190] sm:$0xff]
    %v1181 = vld [vmem:[#allocation8 + $0x198] sm:$0xff]
    %v1182 = vld [vmem:[#allocation8 + $0x1a0] sm:$0xff]
    %v1183 = vld [vmem:[#allocation8 + $0x1a8] sm:$0xff]
    %v1184 = vld [vmem:[#allocation8 + $0x1b0] sm:$0xff]
    %v1185 = vld [vmem:[#allocation8 + $0x1b8] sm:$0xff]
    %v1186 = vld [vmem:[#allocation8 + $0x1c0] sm:$0xff]
    %v1187 = vld [vmem:[#allocation8 + $0x1c8] sm:$0xff]
    %v1188 = vld [vmem:[#allocation8 + $0x1d0] sm:$0xff]
    %v1189 = vld [vmem:[#allocation8 + $0x1d8] sm:$0xff]
    %v1190 = vld [vmem:[#allocation8 + $0x1e0] sm:$0xff]
    %v1191 = vld [vmem:[#allocation8 + $0x1e8] sm:$0xff]
    %v1192 = vld [vmem:[#allocation8 + $0x1f0] sm:$0xff]
    %v1193 = vld [vmem:[#allocation8 + $0x1f8] sm:$0xff]
    %v1194 = vld [vmem:[%s6] sm:$0xf]
    %v1196 = vlaneseq
    %v1197 = vshrl.u32 %v1196, 7
    %v1198 = vsub.s32 0, %v1197
    %v1199 = vrot.slane %v1194, %v1198
    %v1200 = vlaneseq
    %v1201 = vshrl.u32 %v1200, 7
    %v1202 = vsub.s32 1, %v1201
    %v1203 = vrot.slane %v1194, %v1202
    %v1204 = vlaneseq
    %v1205 = vshrl.u32 %v1204, 7
    %v1206 = vsub.s32 2, %v1205
    %v1207 = vrot.slane %v1194, %v1206
    %v1208 = vlaneseq
    %v1209 = vshrl.u32 %v1208, 7
    %v1210 = vsub.s32 3, %v1209
    %v1211 = vrot.slane %v1194, %v1210
    %v1280 = vunpack.c.l.b16 %v1130
    %v1281 = vunpack.c.h.b16 %v1130
    %v1282 = vunpack.c.l.b16 %v1131
    %v1283 = vunpack.c.h.b16 %v1131
    %v1284 = vunpack.c.l.b16 %v1132
    %v1285 = vunpack.c.h.b16 %v1132
    %v1286 = vunpack.c.l.b16 %v1133
    %v1287 = vunpack.c.h.b16 %v1133
    %v1288 = vunpack.c.l.b16 %v1134
    %v1289 = vunpack.c.h.b16 %v1134
    %v1290 = vunpack.c.l.b16 %v1135
    %v1291 = vunpack.c.h.b16 %v1135
    %v1292 = vunpack.c.l.b16 %v1136
    %v1293 = vunpack.c.h.b16 %v1136
    %v1294 = vunpack.c.l.b16 %v1137
    %v1295 = vunpack.c.h.b16 %v1137
    %v1296 = vunpack.c.l.b16 %v1138
    %v1297 = vunpack.c.h.b16 %v1138
    %v1298 = vunpack.c.l.b16 %v1139
    %v1299 = vunpack.c.h.b16 %v1139
    %v1300 = vunpack.c.l.b16 %v1140
    %v1301 = vunpack.c.h.b16 %v1140
    %v1302 = vunpack.c.l.b16 %v1141
    %v1303 = vunpack.c.h.b16 %v1141
    %v1304 = vunpack.c.l.b16 %v1142
    %v1305 = vunpack.c.h.b16 %v1142
    %v1306 = vunpack.c.l.b16 %v1143
    %v1307 = vunpack.c.h.b16 %v1143
    %v1308 = vunpack.c.l.b16 %v1144
    %v1309 = vunpack.c.h.b16 %v1144
    %v1310 = vunpack.c.l.b16 %v1145
    %v1311 = vunpack.c.h.b16 %v1145
    %v1312 = vunpack.c.l.b16 %v1146
    %v1313 = vunpack.c.h.b16 %v1146
    %v1314 = vunpack.c.l.b16 %v1147
    %v1315 = vunpack.c.h.b16 %v1147
    %v1316 = vunpack.c.l.b16 %v1148
    %v1317 = vunpack.c.h.b16 %v1148
    %v1318 = vunpack.c.l.b16 %v1149
    %v1319 = vunpack.c.h.b16 %v1149
    %v1320 = vunpack.c.l.b16 %v1150
    %v1321 = vunpack.c.h.b16 %v1150
    %v1322 = vunpack.c.l.b16 %v1151
    %v1323 = vunpack.c.h.b16 %v1151
    %v1324 = vunpack.c.l.b16 %v1152
    %v1325 = vunpack.c.h.b16 %v1152
    %v1326 = vunpack.c.l.b16 %v1153
    %v1327 = vunpack.c.h.b16 %v1153
    %v1328 = vunpack.c.l.b16 %v1154
    %v1329 = vunpack.c.h.b16 %v1154
    %v1330 = vunpack.c.l.b16 %v1155
    %v1331 = vunpack.c.h.b16 %v1155
    %v1332 = vunpack.c.l.b16 %v1156
    %v1333 = vunpack.c.h.b16 %v1156
    %v1334 = vunpack.c.l.b16 %v1157
    %v1335 = vunpack.c.h.b16 %v1157
    %v1336 = vunpack.c.l.b16 %v1158
    %v1337 = vunpack.c.h.b16 %v1158
    %v1338 = vunpack.c.l.b16 %v1159
    %v1339 = vunpack.c.h.b16 %v1159
    %v1340 = vunpack.c.l.b16 %v1160
    %v1341 = vunpack.c.h.b16 %v1160
    %v1342 = vunpack.c.l.b16 %v1161
    %v1343 = vunpack.c.h.b16 %v1161
    %v1344 = vunpack.c.l.b16 %v1162
    %v1345 = vunpack.c.h.b16 %v1162
    %v1346 = vunpack.c.l.b16 %v1163
    %v1347 = vunpack.c.h.b16 %v1163
    %v1348 = vunpack.c.l.b16 %v1164
    %v1349 = vunpack.c.h.b16 %v1164
    %v1350 = vunpack.c.l.b16 %v1165
    %v1351 = vunpack.c.h.b16 %v1165
    %v1352 = vunpack.c.l.b16 %v1166
    %v1353 = vunpack.c.h.b16 %v1166
    %v1354 = vunpack.c.l.b16 %v1167
    %v1355 = vunpack.c.h.b16 %v1167
    %v1356 = vunpack.c.l.b16 %v1168
    %v1357 = vunpack.c.h.b16 %v1168
    %v1358 = vunpack.c.l.b16 %v1169
    %v1359 = vunpack.c.h.b16 %v1169
    %v1360 = vunpack.c.l.b16 %v1170
    %v1361 = vunpack.c.h.b16 %v1170
    %v1362 = vunpack.c.l.b16 %v1171
    %v1363 = vunpack.c.h.b16 %v1171
    %v1364 = vunpack.c.l.b16 %v1172
    %v1365 = vunpack.c.h.b16 %v1172
    %v1366 = vunpack.c.l.b16 %v1173
    %v1367 = vunpack.c.h.b16 %v1173
    %v1368 = vunpack.c.l.b16 %v1174
    %v1369 = vunpack.c.h.b16 %v1174
    %v1370 = vunpack.c.l.b16 %v1175
    %v1371 = vunpack.c.h.b16 %v1175
    %v1372 = vunpack.c.l.b16 %v1176
    %v1373 = vunpack.c.h.b16 %v1176
    %v1374 = vunpack.c.l.b16 %v1177
    %v1375 = vunpack.c.h.b16 %v1177
    %v1376 = vunpack.c.l.b16 %v1178
    %v1377 = vunpack.c.h.b16 %v1178
    %v1378 = vunpack.c.l.b16 %v1179
    %v1379 = vunpack.c.h.b16 %v1179
    %v1380 = vunpack.c.l.b16 %v1180
    %v1381 = vunpack.c.h.b16 %v1180
    %v1382 = vunpack.c.l.b16 %v1181
    %v1383 = vunpack.c.h.b16 %v1181
    %v1384 = vunpack.c.l.b16 %v1182
    %v1385 = vunpack.c.h.b16 %v1182
    %v1386 = vunpack.c.l.b16 %v1183
    %v1387 = vunpack.c.h.b16 %v1183
    %v1388 = vunpack.c.l.b16 %v1184
    %v1389 = vunpack.c.h.b16 %v1184
    %v1390 = vunpack.c.l.b16 %v1185
    %v1391 = vunpack.c.h.b16 %v1185
    %v1392 = vunpack.c.l.b16 %v1186
    %v1393 = vunpack.c.h.b16 %v1186
    %v1394 = vunpack.c.l.b16 %v1187
    %v1395 = vunpack.c.h.b16 %v1187
    %v1396 = vunpack.c.l.b16 %v1188
    %v1397 = vunpack.c.h.b16 %v1188
    %v1398 = vunpack.c.l.b16 %v1189
    %v1399 = vunpack.c.h.b16 %v1189
    %v1400 = vunpack.c.l.b16 %v1190
    %v1401 = vunpack.c.h.b16 %v1190
    %v1402 = vunpack.c.l.b16 %v1191
    %v1403 = vunpack.c.h.b16 %v1191
    %v1404 = vunpack.c.l.b16 %v1192
    %v1405 = vunpack.c.h.b16 %v1192
    %v1406 = vunpack.c.l.b16 %v1193
    %v1407 = vunpack.c.h.b16 %v1193
    %v1408 = vpack.c.b16 %v1284, %v1280
    %v1409 = vpack.c.b16 %v1285, %v1281
    %v1410 = vpack.c.b16 %v1286, %v1282
    %v1411 = vpack.c.b16 %v1287, %v1283
    %v1412 = vpack.c.b16 %v1292, %v1288
    %v1413 = vpack.c.b16 %v1293, %v1289
    %v1414 = vpack.c.b16 %v1294, %v1290
    %v1415 = vpack.c.b16 %v1295, %v1291
    %v1416 = vpack.c.b16 %v1300, %v1296
    %v1417 = vpack.c.b16 %v1301, %v1297
    %v1418 = vpack.c.b16 %v1302, %v1298
    %v1419 = vpack.c.b16 %v1303, %v1299
    %v1420 = vpack.c.b16 %v1308, %v1304
    %v1421 = vpack.c.b16 %v1309, %v1305
    %v1422 = vpack.c.b16 %v1310, %v1306
    %v1423 = vpack.c.b16 %v1311, %v1307
    %v1424 = vpack.c.b16 %v1316, %v1312
    %v1425 = vpack.c.b16 %v1317, %v1313
    %v1426 = vpack.c.b16 %v1318, %v1314
    %v1427 = vpack.c.b16 %v1319, %v1315
    %v1428 = vpack.c.b16 %v1324, %v1320
    %v1429 = vpack.c.b16 %v1325, %v1321
    %v1430 = vpack.c.b16 %v1326, %v1322
    %v1431 = vpack.c.b16 %v1327, %v1323
    %v1432 = vpack.c.b16 %v1332, %v1328
    %v1433 = vpack.c.b16 %v1333, %v1329
    %v1434 = vpack.c.b16 %v1334, %v1330
    %v1435 = vpack.c.b16 %v1335, %v1331
    %v1436 = vpack.c.b16 %v1340, %v1336
    %v1437 = vpack.c.b16 %v1341, %v1337
    %v1438 = vpack.c.b16 %v1342, %v1338
    %v1439 = vpack.c.b16 %v1343, %v1339
    %v1440 = vpack.c.b16 %v1348, %v1344
    %v1441 = vpack.c.b16 %v1349, %v1345
    %v1442 = vpack.c.b16 %v1350, %v1346
    %v1443 = vpack.c.b16 %v1351, %v1347
    %v1444 = vpack.c.b16 %v1356, %v1352
    %v1445 = vpack.c.b16 %v1357, %v1353
    %v1446 = vpack.c.b16 %v1358, %v1354
    %v1447 = vpack.c.b16 %v1359, %v1355
    %v1448 = vpack.c.b16 %v1364, %v1360
    %v1449 = vpack.c.b16 %v1365, %v1361
    %v1450 = vpack.c.b16 %v1366, %v1362
    %v1451 = vpack.c.b16 %v1367, %v1363
    %v1452 = vpack.c.b16 %v1372, %v1368
    %v1453 = vpack.c.b16 %v1373, %v1369
    %v1454 = vpack.c.b16 %v1374, %v1370
    %v1455 = vpack.c.b16 %v1375, %v1371
    %v1456 = vpack.c.b16 %v1380, %v1376
    %v1457 = vpack.c.b16 %v1381, %v1377
    %v1458 = vpack.c.b16 %v1382, %v1378
    %v1459 = vpack.c.b16 %v1383, %v1379
    %v1460 = vpack.c.b16 %v1388, %v1384
    %v1461 = vpack.c.b16 %v1389, %v1385
    %v1462 = vpack.c.b16 %v1390, %v1386
    %v1463 = vpack.c.b16 %v1391, %v1387
    %v1464 = vpack.c.b16 %v1396, %v1392
    %v1465 = vpack.c.b16 %v1397, %v1393
    %v1466 = vpack.c.b16 %v1398, %v1394
    %v1467 = vpack.c.b16 %v1399, %v1395
    %v1468 = vpack.c.b16 %v1404, %v1400
    %v1469 = vpack.c.b16 %v1405, %v1401
    %v1470 = vpack.c.b16 %v1406, %v1402
    %v1471 = vpack.c.b16 %v1407, %v1403
    %1536 = vmatprep.subr.bf16.mxu0 %v1409
    %1537 = vmatpush1.bf16.msra.mxu0 %v1408
    %1538 = vmatprep.subr.bf16.mxu0 %v1413
    %1539 = vmatpush1.bf16.msra.mxu0 %v1412
    %1540 = vmatprep.subr.bf16.mxu0 %v1417
    %1541 = vmatpush1.bf16.msra.mxu0 %v1416
    %1542 = vmatprep.subr.bf16.mxu0 %v1421
    %1543 = vmatpush1.bf16.msra.mxu0 %v1420
    %1544 = vmatprep.subr.bf16.mxu0 %v1425
    %1545 = vmatpush1.bf16.msra.mxu0 %v1424
    %1546 = vmatprep.subr.bf16.mxu0 %v1429
    %1547 = vmatpush1.bf16.msra.mxu0 %v1428
    %1548 = vmatprep.subr.bf16.mxu0 %v1433
    %1549 = vmatpush1.bf16.msra.mxu0 %v1432
    %1550 = vmatprep.subr.bf16.mxu0 %v1437
    %1551 = vmatpush1.bf16.msra.mxu0 %v1436
    %1552 = vmatprep.subr.bf16.mxu0 %v1441
    %1553 = vmatpush1.bf16.msra.mxu0 %v1440
    %1554 = vmatprep.subr.bf16.mxu0 %v1445
    %1555 = vmatpush1.bf16.msra.mxu0 %v1444
    %1556 = vmatprep.subr.bf16.mxu0 %v1449
    %1557 = vmatpush1.bf16.msra.mxu0 %v1448
    %1558 = vmatprep.subr.bf16.mxu0 %v1453
    %1559 = vmatpush1.bf16.msra.mxu0 %v1452
    %1560 = vmatprep.subr.bf16.mxu0 %v1457
    %1561 = vmatpush1.bf16.msra.mxu0 %v1456
    %1562 = vmatprep.subr.bf16.mxu0 %v1461
    %1563 = vmatpush1.bf16.msra.mxu0 %v1460
    %1564 = vmatprep.subr.bf16.mxu0 %v1465
    %1565 = vmatpush1.bf16.msra.mxu0 %v1464
    %1566 = vmatprep.subr.bf16.mxu0 %v1469
    %1567 = vmatpush1.bf16.msra.mxu0 %v1468
    %1568 = vmatprep.mubr.bf16.mxu0 %v185
    %1569 = vmatmul.mubr.bf16.gmra.mrb[0].mxu0 %v184
    %v1570 = vpop.f32.mrb[0].mxu0
    %v1571 = vadd.f32 %v1199, %v1570
    %v1572 = vpop.f32.mrb[0].mxu0
    %v1573 = vadd.f32 %v1203, %v1572
    %v1574 = vpop.f32.mrb[0].mxu0
    %v1575 = vadd.f32 %v1199, %v1574
    %v1576 = vpop.f32.mrb[0].mxu0
    %v1577 = vadd.f32 %v1203, %v1576
    %1578 = vmatprep.mubr.bf16.mxu0 %v187
    %1579 = vmatmul.mubr.bf16.gmra.mrb[0].mxu0 %v186
    %v1580 = vpop.f32.mrb[0].mxu0
    %v1581 = vadd.f32 %v1199, %v1580
    %v1582 = vpop.f32.mrb[0].mxu0
    %v1583 = vadd.f32 %v1203, %v1582
    %v1584 = vpop.f32.mrb[0].mxu0
    %v1585 = vadd.f32 %v1199, %v1584
    %v1586 = vpop.f32.mrb[0].mxu0
    %v1587 = vadd.f32 %v1203, %v1586
    %1588 = vdwg.mxu0
    %1589 = vmatprep.subr.bf16.mxu0 %v1411
    %1590 = vmatpush1.bf16.msra.mxu0 %v1410
    %1591 = vmatprep.subr.bf16.mxu0 %v1415
    %1592 = vmatpush1.bf16.msra.mxu0 %v1414
    %1593 = vmatprep.subr.bf16.mxu0 %v1419
    %1594 = vmatpush1.bf16.msra.mxu0 %v1418
    %1595 = vmatprep.subr.bf16.mxu0 %v1423
    %1596 = vmatpush1.bf16.msra.mxu0 %v1422
    %1597 = vmatprep.subr.bf16.mxu0 %v1427
    %1598 = vmatpush1.bf16.msra.mxu0 %v1426
    %1599 = vmatprep.subr.bf16.mxu0 %v1431
    %1600 = vmatpush1.bf16.msra.mxu0 %v1430
    %1601 = vmatprep.subr.bf16.mxu0 %v1435
    %1602 = vmatpush1.bf16.msra.mxu0 %v1434
    %1603 = vmatprep.subr.bf16.mxu0 %v1439
    %1604 = vmatpush1.bf16.msra.mxu0 %v1438
    %1605 = vmatprep.subr.bf16.mxu0 %v1443
    %1606 = vmatpush1.bf16.msra.mxu0 %v1442
    %1607 = vmatprep.subr.bf16.mxu0 %v1447
    %1608 = vmatpush1.bf16.msra.mxu0 %v1446
    %1609 = vmatprep.subr.bf16.mxu0 %v1451
    %1610 = vmatpush1.bf16.msra.mxu0 %v1450
    %1611 = vmatprep.subr.bf16.mxu0 %v1455
    %1612 = vmatpush1.bf16.msra.mxu0 %v1454
    %1613 = vmatprep.subr.bf16.mxu0 %v1459
    %1614 = vmatpush1.bf16.msra.mxu0 %v1458
    %1615 = vmatprep.subr.bf16.mxu0 %v1463
    %1616 = vmatpush1.bf16.msra.mxu0 %v1462
    %1617 = vmatprep.subr.bf16.mxu0 %v1467
    %1618 = vmatpush1.bf16.msra.mxu0 %v1466
    %1619 = vmatprep.subr.bf16.mxu0 %v1471
    %1620 = vmatpush1.bf16.msra.mxu0 %v1470
    %1621 = vmatprep.mubr.bf16.mxu0 %v185
    %1622 = vmatmul.mubr.bf16.gmra.mrb[0].mxu0 %v184
    %v1623 = vpop.f32.mrb[0].mxu0
    %v1624 = vadd.f32 %v1207, %v1623
    %v1625 = vpop.f32.mrb[0].mxu0
    %v1626 = vadd.f32 %v1211, %v1625
    %v1627 = vpop.f32.mrb[0].mxu0
    %v1628 = vadd.f32 %v1207, %v1627
    %v1629 = vpop.f32.mrb[0].mxu0
    %v1630 = vadd.f32 %v1211, %v1629
    %1631 = vmatprep.mubr.bf16.mxu0 %v187
    %1632 = vmatmul.mubr.bf16.gmra.mrb[0].mxu0 %v186
    %v1633 = vpop.f32.mrb[0].mxu0
    %v1634 = vadd.f32 %v1207, %v1633
    %v1635 = vpop.f32.mrb[0].mxu0
    %v1636 = vadd.f32 %v1211, %v1635
    %v1637 = vpop.f32.mrb[0].mxu0
    %v1638 = vadd.f32 %v1207, %v1637
    %v1639 = vpop.f32.mrb[0].mxu0
    %v1640 = vadd.f32 %v1211, %v1639
    %1641 = vdwg.mxu0
    %v1642 = vxor.u32 %v1059, 2147483648
    %v1643 = vxor.u32 %v1061, 2147483648
    %v1644 = vxor.u32 %v1112, 2147483648
    %v1645 = vxor.u32 %v1114, 2147483648
    %v1646 = vxor.u32 %v1063, 2147483648
    %v1647 = vxor.u32 %v1065, 2147483648
    %v1648 = vxor.u32 %v1116, 2147483648
    %v1649 = vxor.u32 %v1118, 2147483648
    %v1650 = vxor.u32 %v1069, 2147483648
    %v1651 = vxor.u32 %v1071, 2147483648
    %v1652 = vxor.u32 %v1122, 2147483648
    %v1653 = vxor.u32 %v1124, 2147483648
    %v1654 = vxor.u32 %v1073, 2147483648
    %v1655 = vxor.u32 %v1075, 2147483648
    %v1656 = vxor.u32 %v1126, 2147483648
    %v1657 = vxor.u32 %v1128, 2147483648
    %v1658 = vmul.f32 %v1642, 1.442695
    %v1659 = vpow.pop %v1658
    %v1660 = vmul.f32 %v1643, 1.442695
    %v1661 = vpow.pop %v1660
    %v1662 = vmul.f32 %v1644, 1.442695
    %v1663 = vpow.pop %v1662
    %v1664 = vmul.f32 %v1645, 1.442695
    %v1665 = vpow.pop %v1664
    %v1666 = vmul.f32 %v1646, 1.442695
    %v1667 = vpow.pop %v1666
    %v1668 = vmul.f32 %v1647, 1.442695
    %v1669 = vpow.pop %v1668
    %v1670 = vmul.f32 %v1648, 1.442695
    %v1671 = vpow.pop %v1670
    %v1672 = vmul.f32 %v1649, 1.442695
    %v1673 = vpow.pop %v1672
    %v1674 = vmul.f32 %v1650, 1.442695
    %v1675 = vpow.pop %v1674
    %v1676 = vmul.f32 %v1651, 1.442695
    %v1677 = vpow.pop %v1676
    %v1678 = vmul.f32 %v1652, 1.442695
    %v1679 = vpow.pop %v1678
    %v1680 = vmul.f32 %v1653, 1.442695
    %v1681 = vpow.pop %v1680
    %v1682 = vmul.f32 %v1654, 1.442695
    %v1683 = vpow.pop %v1682
    %v1684 = vmul.f32 %v1655, 1.442695
    %v1685 = vpow.pop %v1684
    %v1686 = vmul.f32 %v1656, 1.442695
    %v1687 = vpow.pop %v1686
    %v1688 = vmul.f32 %v1657, 1.442695
    %v1689 = vpow.pop %v1688
    %v1690 = vadd.f32 %v1659, 1.0
    %v1691 = vadd.f32 %v1661, 1.0
    %v1692 = vadd.f32 %v1663, 1.0
    %v1693 = vadd.f32 %v1665, 1.0
    %v1694 = vadd.f32 %v1667, 1.0
    %v1695 = vadd.f32 %v1669, 1.0
    %v1696 = vadd.f32 %v1671, 1.0
    %v1697 = vadd.f32 %v1673, 1.0
    %v1698 = vadd.f32 %v1675, 1.0
    %v1699 = vadd.f32 %v1677, 1.0
    %v1700 = vadd.f32 %v1679, 1.0
    %v1701 = vadd.f32 %v1681, 1.0
    %v1702 = vadd.f32 %v1683, 1.0
    %v1703 = vadd.f32 %v1685, 1.0
    %v1704 = vadd.f32 %v1687, 1.0
    %v1705 = vadd.f32 %v1689, 1.0
    %v1706 = vrcp.pop %v1690
    %v1707 = vmul.f32 1.0, %v1706
    %v1708 = vrcp.pop %v1691
    %v1709 = vmul.f32 1.0, %v1708
    %v1710 = vrcp.pop %v1692
    %v1711 = vmul.f32 1.0, %v1710
    %v1712 = vrcp.pop %v1693
    %v1713 = vmul.f32 1.0, %v1712
    %v1714 = vrcp.pop %v1694
    %v1715 = vmul.f32 1.0, %v1714
    %v1716 = vrcp.pop %v1695
    %v1717 = vmul.f32 1.0, %v1716
    %v1718 = vrcp.pop %v1696
    %v1719 = vmul.f32 1.0, %v1718
    %v1720 = vrcp.pop %v1697
    %v1721 = vmul.f32 1.0, %v1720
    %v1722 = vrcp.pop %v1698
    %v1723 = vmul.f32 1.0, %v1722
    %v1724 = vrcp.pop %v1699
    %v1725 = vmul.f32 1.0, %v1724
    %v1726 = vrcp.pop %v1700
    %v1727 = vmul.f32 1.0, %v1726
    %v1728 = vrcp.pop %v1701
    %v1729 = vmul.f32 1.0, %v1728
    %v1730 = vrcp.pop %v1702
    %v1731 = vmul.f32 1.0, %v1730
    %v1732 = vrcp.pop %v1703
    %v1733 = vmul.f32 1.0, %v1732
    %v1734 = vrcp.pop %v1704
    %v1735 = vmul.f32 1.0, %v1734
    %v1736 = vrcp.pop %v1705
    %v1737 = vmul.f32 1.0, %v1736
    %v1738 = vmul.f32 %v547, %v1707
    %v1739 = vmul.f32 %v549, %v1709
    %v1740 = vmul.f32 %v600, %v1711
    %v1741 = vmul.f32 %v602, %v1713
    %v1742 = vmul.f32 %v551, %v1715
    %v1743 = vmul.f32 %v553, %v1717
    %v1744 = vmul.f32 %v604, %v1719
    %v1745 = vmul.f32 %v606, %v1721
    %v1746 = vmul.f32 %v557, %v1723
    %v1747 = vmul.f32 %v559, %v1725
    %v1748 = vmul.f32 %v610, %v1727
    %v1749 = vmul.f32 %v612, %v1729
    %v1750 = vmul.f32 %v561, %v1731
    %v1751 = vmul.f32 %v563, %v1733
    %v1752 = vmul.f32 %v614, %v1735
    %v1753 = vmul.f32 %v616, %v1737
    %v1754 = vadd.f32 %v1738, %v1571
    %v1755 = vadd.f32 %v1739, %v1573
    %v1756 = vadd.f32 %v1740, %v1624
    %v1757 = vadd.f32 %v1741, %v1626
    %v1758 = vadd.f32 %v1742, %v1575
    %v1759 = vadd.f32 %v1743, %v1577
    %v1760 = vadd.f32 %v1744, %v1628
    %v1761 = vadd.f32 %v1745, %v1630
    %v1762 = vadd.f32 %v1746, %v1581
    %v1763 = vadd.f32 %v1747, %v1583
    %v1764 = vadd.f32 %v1748, %v1634
    %v1765 = vadd.f32 %v1749, %v1636
    %v1766 = vadd.f32 %v1750, %v1585
    %v1767 = vadd.f32 %v1751, %v1587
    %v1768 = vadd.f32 %v1752, %v1638
    %v1769 = vadd.f32 %v1753, %v1640
    %1770 = vst [vmem:[#allocation10] sm:$0xff] %v1754
    %1771 = vst [vmem:[#allocation10 + $0x8] sm:$0xff] %v1755
    %1772 = vst [vmem:[#allocation10 + $0x10] sm:$0xff] %v1756
    %1773 = vst [vmem:[#allocation10 + $0x18] sm:$0xff] %v1757
    %1774 = vst [vmem:[#allocation10 + $0x20] sm:$0xff] %v1758
    %1775 = vst [vmem:[#allocation10 + $0x28] sm:$0xff] %v1759
    %1776 = vst [vmem:[#allocation10 + $0x30] sm:$0xff] %v1760
    %1777 = vst [vmem:[#allocation10 + $0x38] sm:$0xff] %v1761
    %1778 = vst [vmem:[#allocation10 + $0x40] sm:$0xff] %v1762
    %1779 = vst [vmem:[#allocation10 + $0x48] sm:$0xff] %v1763
    %1780 = vst [vmem:[#allocation10 + $0x50] sm:$0xff] %v1764
    %1781 = vst [vmem:[#allocation10 + $0x58] sm:$0xff] %v1765
    %1782 = vst [vmem:[#allocation10 + $0x60] sm:$0xff] %v1766
    %1783 = vst [vmem:[#allocation10 + $0x68] sm:$0xff] %v1767
    %1784 = vst [vmem:[#allocation10 + $0x70] sm:$0xff] %v1768
    %1785 = vst [vmem:[#allocation10 + $0x78] sm:$0xff] %v1769
    // Predicated region
    $region46: #{tpu_custom_call.1} parent=1 // pred_check
      _
    $region47: #{tpu_custom_call.1} parent=1 // pred_check_branch
      %1787 = sbr.rel (0) target = $region49
    $region48: #{tpu_custom_call.1} parent=1 // pred_region
      %s1789 = ssub.s32 2048, 2048
      %1790 = vsyncadd [#allocation4], %s1789
      %s1791 = sshll.u32 [#allocation10], 4
      %s1792 = int_to_ptr.vmem [resolvable:$true] %s1791
      %1797 = dma.vmem_to_hbm [thread:$0]  %s1792, 2048, %s7, [#allocation4], 512, 512, 32
    $region49: #{tpu_custom_call.1} parent=1 // pred_fallthru
      _
    // Predicated region
    $region50: #{tpu_custom_call.1} parent=1 // pred_check
      _
    $region51: #{tpu_custom_call.1} parent=1 // pred_check_branch
      %1799 = sbr.rel (0) target = $region53
    $region52: #{tpu_custom_call.1} parent=1 // pred_region
      %1800 = dma.done [#allocation4], 2048
    $region53: #{tpu_custom_call.1} parent=1 // pred_fallthru
      _
    %1801 = vsyncpa [#allocation3], 1
    %1802 = vsyncpa [#allocation6], 1
    %1803 = vsyncpa [#allocation9], 1
    %1804 = vsyncpa [#allocation4], 1

</llo_original>
